<compile_context>
chip_gen: v7x
topology: tpu7x:2x2x1
jax: 0.10.0
libtpu: 0.0.40
codegen_flags: <defaults>
</compile_context>

<pallas_src>
import jax
import jax.numpy as jnp
from jax.experimental import pallas as pl
from jax.experimental.pallas import tpu as pltpu


def lstm_attention_kernel(
    x_ref,                                   # (T*B, D)  bf16, row = t*B + b
    wih0_ref, b0_ref,                        # (D, 4H) bf16, (1, 4H) f32
    wtop_ref, whh1_ref, b1_ref,              # (H, 8H) bf16, (H, 4H) bf16, (1, 4H) f32
    wq_ref, bq_ref, wk_ref, bk_ref,          # (H, H) bf16, (1, H) f32, (H, H) bf16, (1, H) f32
    we_ref, be_ref,                          # (1, H) f32, (1, 1) f32
    wfc_ref, bfc_ref,                        # (H, OUT) bf16, (1, OUT) f32
    out_ref, attn_ref,                       # (B, OUT) f32, (B, T) f32
    xp0_ref, h1_ref,                         # scratch: (T*B, 4H) f32, (T*B, H) f32
):
    B, T = attn_ref.shape
    H = whh1_ref.shape[0]
    H4 = 4 * H
    f32, bf16 = jnp.float32, jnp.bfloat16

    # Hoisted layer-0 input projection for all T steps (single MXU call), kept
    # in VMEM scratch so the unrolled recurrence reloads (B, 4H) slices instead
    # of holding T*B rows live in vregs.
    xp0_ref[...] = (jnp.dot(x_ref[...], wih0_ref[...], preferred_element_type=f32)
                    + b0_ref[...])

    def lstm_cell(gates, c):
        # g-gate weight/bias columns are pre-scaled by 2 in the wrapper, so
        # tanh(z) is recovered from the single sigmoid pass: 2*sigmoid(2z) - 1.
        sg = jax.nn.sigmoid(gates)                                  # one EUP pass over (B, 4H)
        i, f, o = sg[:, :H], sg[:, H:2 * H], sg[:, 3 * H:]
        g = 2.0 * sg[:, 2 * H:3 * H] - 1.0
        c_new = f * c + i * g
        h_new = o * jnp.tanh(c_new)                                 # second (and last) EUP pass
        return h_new, c_new

    b1 = b1_ref[...]
    wtop = wtop_ref[...]
    whh1 = whh1_ref[...]

    # Software-pipelined interleave of the two layer recurrences.
    # Layer-0 step 0 needs no matmul (h0_{-1} == 0).
    h0, c0 = lstm_cell(xp0_ref[0:B, :], jnp.zeros((B, H), f32))
    h1 = jnp.zeros((B, H), f32)
    c1 = jnp.zeros((B, H), f32)

    for k in range(1, T):                     # static unroll (T small)
        # Two independent MXU pushes; both consume only last iteration's state.
        proj = jnp.dot(h0.astype(bf16), wtop, preferred_element_type=f32)   # (B, 8H)
        rec1 = jnp.dot(h1.astype(bf16), whh1, preferred_element_type=f32)   # (B, 4H)
        gates0 = xp0_ref[k * B:(k + 1) * B, :] + proj[:, :H4]
        gates1 = proj[:, H4:] + rec1 + b1
        h1, c1 = lstm_cell(gates1, c1)                    # layer-1 step k-1
        h1_ref[(k - 1) * B:k * B, :] = h1
        h0, c0 = lstm_cell(gates0, c0)                    # layer-0 step k
    # Drain: layer-1 step T-1 (the layer-0 half of proj is discarded).
    proj = jnp.dot(h0.astype(bf16), wtop, preferred_element_type=f32)
    rec1 = jnp.dot(h1.astype(bf16), whh1, preferred_element_type=f32)
    h1, c1 = lstm_cell(proj[:, H4:] + rec1 + b1, c1)
    h1_ref[(T - 1) * B:T * B, :] = h1
    h_last = h1                                           # == hn[-1]
    # TODO(synk): nn.LSTM inter-layer dropout (p=0.2) is train-only; eval semantics here.

    # ---- AdditiveAttention: query = hn[-1], keys = values = lstm_out (batched epilogue) ----
    slab = h1_ref[...]                                                   # (T*B, H) f32
    q = jnp.dot(h_last.astype(bf16), wq_ref[...],
                preferred_element_type=f32) + bq_ref[...]                # (B, H)
    K = jnp.dot(slab.astype(bf16), wk_ref[...],
                preferred_element_type=f32) + bk_ref[...]                # (T*B, H), one matmul
    E = jnp.tanh(K + jnp.tile(q, (T, 1)))                                # one EUP pass
    s_col = jnp.sum(E * we_ref[...], axis=1, keepdims=True) + be_ref[...]  # (T*B, 1), one lane reduce

    # Softmax over T for every batch row, staying in the flat layout:
    # cross-T combines are T-1 tiny (B,1) tile ops; exp runs once on the column.
    m = s_col[0:B, :]
    for t in range(1, T):
        m = jnp.maximum(m, s_col[t * B:(t + 1) * B, :])
    ex = jnp.exp(s_col - jnp.tile(m, (T, 1)))                            # (T*B, 1)
    denom = ex[0:B, :]
    for t in range(1, T):
        denom = denom + ex[t * B:(t + 1) * B, :]
    w_col = ex * jnp.tile(pl.reciprocal(denom, approx=False), (T, 1))    # (T*B, 1)

    attn_ref[...] = jnp.concatenate(
        [w_col[t * B:(t + 1) * B, :] for t in range(T)], axis=1)         # (B, T), one-time

    # context = sum_t w_t * h1_t: one (T*B, H) multiply + T-1 tile adds.
    weighted = w_col * slab                                              # (T*B, H)
    ctx = weighted[0:B, :]
    for t in range(1, T):
        ctx = ctx + weighted[t * B:(t + 1) * B, :]
    out_ref[...] = jnp.dot(ctx.astype(bf16), wfc_ref[...],
                           preferred_element_type=f32) + bfc_ref[...]


def lstm_model_forward(x, p):
    B, T, D = x.shape
    H = p["whh0"].shape[1]
    out_dim = p["wfc"].shape[0]
    bf16 = jnp.bfloat16

    # Layout / dtype plumbing only (no compute hoisted out of the kernel):
    #  * x -> time-major flat (T*B, D): per-step slices are aligned 8-row views.
    #  * weights pre-transposed to (in, out) and cast to bf16 for the MXU.
    #  * g-gate columns / bias entries pre-scaled by 2 (exact in bf16) so the
    #    kernel recovers tanh from the sigmoid pass.
    #  * per-layer biases combined (bih + bhh).
    #  * layer-0 recurrent and layer-1 input weights fused into one (H, 8H) RHS
    #    for the interleaved per-step matmul.
    def prep_gate_w(w):          # (4H, in) -> (in, 4H) with g block scaled by 2
        wt = w.T
        return wt.at[:, 2 * H:3 * H].multiply(2.0)

    def prep_gate_b(bih, bhh):   # (1, 4H) combined, g block scaled by 2
        b = bih + bhh
        return b.at[:, 2 * H:3 * H].multiply(2.0)

    wih0_t = prep_gate_w(p["wih0"])
    wtop = jnp.concatenate([prep_gate_w(p["whh0"]), prep_gate_w(p["wih1"])], axis=1)
    whh1_t = prep_gate_w(p["whh1"])
    b0 = prep_gate_b(p["bih0"], p["bhh0"])
    b1 = prep_gate_b(p["bih1"], p["bhh1"])

    x_tb = jnp.transpose(x, (1, 0, 2)).reshape(T * B, D).astype(bf16)    # row = t*B + b

    args = (
        x_tb,
        wih0_t.astype(bf16), b0,
        wtop.astype(bf16), whh1_t.astype(bf16), b1,
        p["wq"].T.astype(bf16), p["bq"],
        p["wk"].T.astype(bf16), p["bk"],
        p["we"], p["be"],
        p["wfc"].T.astype(bf16), p["bfc"],
    )
    vmem = pl.BlockSpec(memory_space=pltpu.MemorySpace.VMEM)
    # Gridless: the working set is a few KiB (far under VMEM on v5e/v6e/v7x)
    # and the kernel is latency-bound on the recurrence, so tiling would only
    # add per-step overhead.  For B >= 16 on v7x, add a leading batch grid axis
    # with dimension_semantics=("parallel",) to use the second TensorCore.
    return pl.pallas_call(
        lstm_attention_kernel,
        out_shape=(jax.ShapeDtypeStruct((B, out_dim), jnp.float32),
                   jax.ShapeDtypeStruct((B, T), jnp.float32)),
        in_specs=[vmem] * len(args),
        out_specs=(vmem, vmem),
        scratch_shapes=[pltpu.VMEM((T * B, 4 * H), jnp.float32),   # xp0 slab
                        pltpu.VMEM((T * B, H), jnp.float32)],      # layer-1 output slab
    )(*args)


def reference_forward(x, p):
    B, T, _ = x.shape
    H = p["whh0"].shape[1]

    def layer(inp, wih, whh, bih, bhh):
        h = jnp.zeros((B, H), jnp.float32)
        c = jnp.zeros((B, H), jnp.float32)
        outs = []
        for t in range(T):
            g = inp[:, t, :] @ wih.T + h @ whh.T + bih + bhh
            i, f, gg, o = (jax.nn.sigmoid(g[:, :H]), jax.nn.sigmoid(g[:, H:2 * H]),
                           jnp.tanh(g[:, 2 * H:3 * H]), jax.nn.sigmoid(g[:, 3 * H:]))
            c = f * c + i * gg
            h = o * jnp.tanh(c)
            outs.append(h)
        return jnp.stack(outs, axis=1), h

    o0, _ = layer(x, p["wih0"], p["whh0"], p["bih0"], p["bhh0"])
    o1, h_last = layer(o0, p["wih1"], p["whh1"], p["bih1"], p["bhh1"])
    q = (h_last @ p["wq"].T + p["bq"])[:, None, :]
    k = o1 @ p["wk"].T + p["bk"]
    e = jnp.tanh(q + k)
    s = (e @ p["we"].T + p["be"])[..., 0]
    w = jax.nn.softmax(s, axis=-1)
    ctx = jnp.einsum("bt,bth->bh", w, o1)
    return ctx @ p["wfc"].T + p["bfc"], w


def init_params(key, input_dim, hidden_dim, output_dim):
    H = hidden_dim
    ks = jax.random.split(key, 20)
    u = lambda k, shape, fan: jax.random.uniform(
        k, shape, jnp.float32, -1.0 / jnp.sqrt(fan), 1.0 / jnp.sqrt(fan))
    return {
        # LSTM layer 0
        "wih0": u(ks[0], (4 * H, input_dim), H),
        "whh0": u(ks[1], (4 * H, H), H),
        "bih0": u(ks[2], (1, 4 * H), H),
        "bhh0": u(ks[3], (1, 4 * H), H),
        # LSTM layer 1
        "wih1": u(ks[4], (4 * H, H), H),
        "whh1": u(ks[5], (4 * H, H), H),
        "bih1": u(ks[6], (1, 4 * H), H),
        "bhh1": u(ks[7], (1, 4 * H), H),
        # AdditiveAttention
        "wq": u(ks[8], (H, H), H), "bq": u(ks[9], (1, H), H),
        "wk": u(ks[10], (H, H), H), "bk": u(ks[11], (1, H), H),
        "we": u(ks[12], (1, H), H), "be": u(ks[13], (1, 1), H),
        # fc
        "wfc": u(ks[14], (output_dim, H), H), "bfc": u(ks[15], (1, output_dim), H),
    }


if __name__ == "__main__":
    B, T, D, H, OUT = 8, 8, 16, 32, 4
    key = jax.random.PRNGKey(0)
    kx, kp = jax.random.split(key)
    x = jax.random.normal(kx, (B, T, D), jnp.float32)
    params = init_params(kp, D, H, OUT)

    out, attn = jax.block_until_ready(lstm_model_forward(x, params))
    ref_out, ref_attn = reference_forward(x, params)

    assert out.shape == (B, OUT) and attn.shape == (B, T)
    assert bool(jnp.all(jnp.isfinite(out))) and bool(jnp.all(jnp.isfinite(attn)))
    # bf16 MXU operands with f32 accumulation -> small tolerance vs. the f32 reference.
    assert jnp.allclose(out, ref_out, rtol=2e-2, atol=2e-2)
    assert jnp.allclose(attn, ref_attn, rtol=2e-2, atol=2e-2)
    print("KERNEL_OK")
</pallas_src>

<mosaic_0001>
module attributes {stable_mosaic.version = 11 : i64} {
  func.func @lstm_attention_kernel(%arg0: memref<64x16xbf16, #tpu.memory_space<vmem>>, %arg1: memref<16x128xbf16, #tpu.memory_space<vmem>>, %arg2: memref<1x128xf32, #tpu.memory_space<vmem>>, %arg3: memref<32x256xbf16, #tpu.memory_space<vmem>>, %arg4: memref<32x128xbf16, #tpu.memory_space<vmem>>, %arg5: memref<1x128xf32, #tpu.memory_space<vmem>>, %arg6: memref<32x32xbf16, #tpu.memory_space<vmem>>, %arg7: memref<1x32xf32, #tpu.memory_space<vmem>>, %arg8: memref<32x32xbf16, #tpu.memory_space<vmem>>, %arg9: memref<1x32xf32, #tpu.memory_space<vmem>>, %arg10: memref<1x32xf32, #tpu.memory_space<vmem>>, %arg11: memref<1x1xf32, #tpu.memory_space<vmem>>, %arg12: memref<32x4xbf16, #tpu.memory_space<vmem>>, %arg13: memref<1x4xf32, #tpu.memory_space<vmem>>, %arg14: memref<8x4xf32, #tpu.memory_space<vmem>>, %arg15: memref<8x8xf32, #tpu.memory_space<vmem>>, %arg16: memref<64x128xf32, #tpu.memory_space<vmem>>, %arg17: memref<64x32xf32, #tpu.memory_space<vmem>>) attributes {dimension_semantics = [], scalar_prefetch = 0 : i64, scratch_operands = 2 : i64, tpu.core_type = #tpu.core_type<tc>} {
    %c0 = arith.constant 0 : index
    %c0_0 = arith.constant 0 : index
    %0 = vector.load %arg0[%c0, %c0_0] : memref<64x16xbf16, #tpu.memory_space<vmem>>, vector<64x16xbf16>
    %c0_1 = arith.constant 0 : index
    %c0_2 = arith.constant 0 : index
    %1 = vector.load %arg1[%c0_1, %c0_2] : memref<16x128xbf16, #tpu.memory_space<vmem>>, vector<16x128xbf16>
    %cst = arith.constant dense<0.000000e+00> : vector<64x128xf32>
    %2 = tpu.matmul %0, %1, %cst {dimension_numbers = #tpu.dot_dimension_numbers<[1], [0], [0], [1], [0, 0, 1, 1], [], []>} : vector<64x16xbf16>, vector<16x128xbf16>, vector<64x128xf32> -> vector<64x128xf32>
    %c0_3 = arith.constant 0 : index
    %c0_4 = arith.constant 0 : index
    %3 = vector.load %arg2[%c0_3, %c0_4] : memref<1x128xf32, #tpu.memory_space<vmem>>, vector<1x128xf32>
    %4 = vector.broadcast %3 : vector<1x128xf32> to vector<64x128xf32>
    %5 = arith.addf %2, %4 : vector<64x128xf32>
    %c0_5 = arith.constant 0 : index
    %c0_6 = arith.constant 0 : index
    %6 = vector.load %arg16[%c0_5, %c0_6] : memref<64x128xf32, #tpu.memory_space<vmem>>, vector<64x128xf32>
    tpu.vector_store %arg16[%c0_5, %c0_6], %5 {strides = array<i32>} : memref<64x128xf32, #tpu.memory_space<vmem>>, vector<64x128xf32>,
    %c0_7 = arith.constant 0 : index
    %c0_8 = arith.constant 0 : index
    %7 = vector.load %arg5[%c0_7, %c0_8] : memref<1x128xf32, #tpu.memory_space<vmem>>, vector<1x128xf32>
    %c0_9 = arith.constant 0 : index
    %c0_10 = arith.constant 0 : index
    %8 = vector.load %arg3[%c0_9, %c0_10] : memref<32x256xbf16, #tpu.memory_space<vmem>>, vector<32x256xbf16>
    %c0_11 = arith.constant 0 : index
    %c0_12 = arith.constant 0 : index
    %9 = vector.load %arg4[%c0_11, %c0_12] : memref<32x128xbf16, #tpu.memory_space<vmem>>, vector<32x128xbf16>
    %c0_13 = arith.constant 0 : index
    %c0_14 = arith.constant 0 : index
    %10 = vector.load %arg16[%c0_13, %c0_14] : memref<64x128xf32, #tpu.memory_space<vmem>>, vector<8x128xf32>
    %cst_15 = arith.constant 0.000000e+00 : f32
    %11 = vector.broadcast %cst_15 : f32 to vector<8x32xf32>
    %12 = arith.negf %10 : vector<8x128xf32>
    %13 = math.exp %12 : vector<8x128xf32>
    %cst_16 = arith.constant 1.000000e+00 : f32
    %14 = vector.broadcast %cst_16 : f32 to vector<8x128xf32>
    %15 = arith.addf %14, %13 : vector<8x128xf32>
    %16 = arith.divf %14, %15 : vector<8x128xf32>
    %17 = vector.extract_strided_slice %16 {offsets = [0, 0], sizes = [8, 32], strides = [1, 1]} : vector<8x128xf32> to vector<8x32xf32>
    %18 = vector.extract_strided_slice %16 {offsets = [0, 32], sizes = [8, 32], strides = [1, 1]} : vector<8x128xf32> to vector<8x32xf32>
    %19 = vector.extract_strided_slice %16 {offsets = [0, 96], sizes = [8, 32], strides = [1, 1]} : vector<8x128xf32> to vector<8x32xf32>
    %20 = vector.extract_strided_slice %16 {offsets = [0, 64], sizes = [8, 32], strides = [1, 1]} : vector<8x128xf32> to vector<8x32xf32>
    %cst_17 = arith.constant 2.000000e+00 : f32
    %21 = vector.broadcast %cst_17 : f32 to vector<8x32xf32>
    %22 = arith.mulf %21, %20 : vector<8x32xf32>
    %cst_18 = arith.constant 1.000000e+00 : f32
    %23 = vector.broadcast %cst_18 : f32 to vector<8x32xf32>
    %24 = arith.subf %22, %23 : vector<8x32xf32>
    %25 = arith.mulf %18, %11 : vector<8x32xf32>
    %26 = arith.mulf %17, %24 : vector<8x32xf32>
    %27 = arith.addf %25, %26 : vector<8x32xf32>
    %28 = math.tanh %27 : vector<8x32xf32>
    %29 = arith.mulf %19, %28 : vector<8x32xf32>
    %cst_19 = arith.constant 0.000000e+00 : f32
    %30 = vector.broadcast %cst_19 : f32 to vector<8x32xf32>
    %cst_20 = arith.constant 0.000000e+00 : f32
    %31 = vector.broadcast %cst_20 : f32 to vector<8x32xf32>
    %32 = arith.truncf %29 : vector<8x32xf32> to vector<8x32xbf16>
    %cst_21 = arith.constant dense<0.000000e+00> : vector<8x256xf32>
    %33 = tpu.matmul %32, %8, %cst_21 {dimension_numbers = #tpu.dot_dimension_numbers<[1], [0], [0], [1], [0, 0, 1, 1], [], []>} : vector<8x32xbf16>, vector<32x256xbf16>, vector<8x256xf32> -> vector<8x256xf32>
    %34 = arith.truncf %30 : vector<8x32xf32> to vector<8x32xbf16>
    %cst_22 = arith.constant dense<0.000000e+00> : vector<8x128xf32>
    %35 = tpu.matmul %34, %9, %cst_22 {dimension_numbers = #tpu.dot_dimension_numbers<[1], [0], [0], [1], [0, 0, 1, 1], [], []>} : vector<8x32xbf16>, vector<32x128xbf16>, vector<8x128xf32> -> vector<8x128xf32>
    %c8 = arith.constant 8 : index
    %c0_23 = arith.constant 0 : index
    %36 = vector.load %arg16[%c8, %c0_23] : memref<64x128xf32, #tpu.memory_space<vmem>>, vector<8x128xf32>
    %37 = vector.extract_strided_slice %33 {offsets = [0, 0], sizes = [8, 128], strides = [1, 1]} : vector<8x256xf32> to vector<8x128xf32>
    %38 = arith.addf %36, %37 : vector<8x128xf32>
    %39 = vector.extract_strided_slice %33 {offsets = [0, 128], sizes = [8, 128], strides = [1, 1]} : vector<8x256xf32> to vector<8x128xf32>
    %40 = arith.addf %39, %35 : vector<8x128xf32>
    %41 = vector.broadcast %7 : vector<1x128xf32> to vector<8x128xf32>
    %42 = arith.addf %40, %41 : vector<8x128xf32>
    %43 = arith.negf %42 : vector<8x128xf32>
    %44 = math.exp %43 : vector<8x128xf32>
    %cst_24 = arith.constant 1.000000e+00 : f32
    %45 = vector.broadcast %cst_24 : f32 to vector<8x128xf32>
    %46 = arith.addf %45, %44 : vector<8x128xf32>
    %47 = arith.divf %45, %46 : vector<8x128xf32>
    %48 = vector.extract_strided_slice %47 {offsets = [0, 0], sizes = [8, 32], strides = [1, 1]} : vector<8x128xf32> to vector<8x32xf32>
    %49 = vector.extract_strided_slice %47 {offsets = [0, 32], sizes = [8, 32], strides = [1, 1]} : vector<8x128xf32> to vector<8x32xf32>
    %50 = vector.extract_strided_slice %47 {offsets = [0, 96], sizes = [8, 32], strides = [1, 1]} : vector<8x128xf32> to vector<8x32xf32>
    %51 = vector.extract_strided_slice %47 {offsets = [0, 64], sizes = [8, 32], strides = [1, 1]} : vector<8x128xf32> to vector<8x32xf32>
    %cst_25 = arith.constant 2.000000e+00 : f32
    %52 = vector.broadcast %cst_25 : f32 to vector<8x32xf32>
    %53 = arith.mulf %52, %51 : vector<8x32xf32>
    %cst_26 = arith.constant 1.000000e+00 : f32
    %54 = vector.broadcast %cst_26 : f32 to vector<8x32xf32>
    %55 = arith.subf %53, %54 : vector<8x32xf32>
    %56 = arith.mulf %49, %31 : vector<8x32xf32>
    %57 = arith.mulf %48, %55 : vector<8x32xf32>
    %58 = arith.addf %56, %57 : vector<8x32xf32>
    %59 = math.tanh %58 : vector<8x32xf32>
    %60 = arith.mulf %50, %59 : vector<8x32xf32>
    %c0_27 = arith.constant 0 : index
    %c0_28 = arith.constant 0 : index
    %61 = vector.load %arg17[%c0_27, %c0_28] : memref<64x32xf32, #tpu.memory_space<vmem>>, vector<8x32xf32>
    tpu.vector_store %arg17[%c0_27, %c0_28], %60 {strides = array<i32>} : memref<64x32xf32, #tpu.memory_space<vmem>>, vector<8x32xf32>,
    %62 = arith.negf %38 : vector<8x128xf32>
    %63 = math.exp %62 : vector<8x128xf32>
    %cst_29 = arith.constant 1.000000e+00 : f32
    %64 = vector.broadcast %cst_29 : f32 to vector<8x128xf32>
    %65 = arith.addf %64, %63 : vector<8x128xf32>
    %66 = arith.divf %64, %65 : vector<8x128xf32>
    %67 = vector.extract_strided_slice %66 {offsets = [0, 0], sizes = [8, 32], strides = [1, 1]} : vector<8x128xf32> to vector<8x32xf32>
    %68 = vector.extract_strided_slice %66 {offsets = [0, 32], sizes = [8, 32], strides = [1, 1]} : vector<8x128xf32> to vector<8x32xf32>
    %69 = vector.extract_strided_slice %66 {offsets = [0, 96], sizes = [8, 32], strides = [1, 1]} : vector<8x128xf32> to vector<8x32xf32>
    %70 = vector.extract_strided_slice %66 {offsets = [0, 64], sizes = [8, 32], strides = [1, 1]} : vector<8x128xf32> to vector<8x32xf32>
    %cst_30 = arith.constant 2.000000e+00 : f32
    %71 = vector.broadcast %cst_30 : f32 to vector<8x32xf32>
    %72 = arith.mulf %71, %70 : vector<8x32xf32>
    %cst_31 = arith.constant 1.000000e+00 : f32
    %73 = vector.broadcast %cst_31 : f32 to vector<8x32xf32>
    %74 = arith.subf %72, %73 : vector<8x32xf32>
    %75 = arith.mulf %68, %27 : vector<8x32xf32>
    %76 = arith.mulf %67, %74 : vector<8x32xf32>
    %77 = arith.addf %75, %76 : vector<8x32xf32>
    %78 = math.tanh %77 : vector<8x32xf32>
    %79 = arith.mulf %69, %78 : vector<8x32xf32>
    %80 = arith.truncf %79 : vector<8x32xf32> to vector<8x32xbf16>
    %cst_32 = arith.constant dense<0.000000e+00> : vector<8x256xf32>
    %81 = tpu.matmul %80, %8, %cst_32 {dimension_numbers = #tpu.dot_dimension_numbers<[1], [0], [0], [1], [0, 0, 1, 1], [], []>} : vector<8x32xbf16>, vector<32x256xbf16>, vector<8x256xf32> -> vector<8x256xf32>
    %82 = arith.truncf %60 : vector<8x32xf32> to vector<8x32xbf16>
    %cst_33 = arith.constant dense<0.000000e+00> : vector<8x128xf32>
    %83 = tpu.matmul %82, %9, %cst_33 {dimension_numbers = #tpu.dot_dimension_numbers<[1], [0], [0], [1], [0, 0, 1, 1], [], []>} : vector<8x32xbf16>, vector<32x128xbf16>, vector<8x128xf32> -> vector<8x128xf32>
    %c16 = arith.constant 16 : index
    %c0_34 = arith.constant 0 : index
    %84 = vector.load %arg16[%c16, %c0_34] : memref<64x128xf32, #tpu.memory_space<vmem>>, vector<8x128xf32>
    %85 = vector.extract_strided_slice %81 {offsets = [0, 0], sizes = [8, 128], strides = [1, 1]} : vector<8x256xf32> to vector<8x128xf32>
    %86 = arith.addf %84, %85 : vector<8x128xf32>
    %87 = vector.extract_strided_slice %81 {offsets = [0, 128], sizes = [8, 128], strides = [1, 1]} : vector<8x256xf32> to vector<8x128xf32>
    %88 = arith.addf %87, %83 : vector<8x128xf32>
    %89 = vector.broadcast %7 : vector<1x128xf32> to vector<8x128xf32>
    %90 = arith.addf %88, %89 : vector<8x128xf32>
    %91 = arith.negf %90 : vector<8x128xf32>
    %92 = math.exp %91 : vector<8x128xf32>
    %cst_35 = arith.constant 1.000000e+00 : f32
    %93 = vector.broadcast %cst_35 : f32 to vector<8x128xf32>
    %94 = arith.addf %93, %92 : vector<8x128xf32>
    %95 = arith.divf %93, %94 : vector<8x128xf32>
    %96 = vector.extract_strided_slice %95 {offsets = [0, 0], sizes = [8, 32], strides = [1, 1]} : vector<8x128xf32> to vector<8x32xf32>
    %97 = vector.extract_strided_slice %95 {offsets = [0, 32], sizes = [8, 32], strides = [1, 1]} : vector<8x128xf32> to vector<8x32xf32>
    %98 = vector.extract_strided_slice %95 {offsets = [0, 96], sizes = [8, 32], strides = [1, 1]} : vector<8x128xf32> to vector<8x32xf32>
    %99 = vector.extract_strided_slice %95 {offsets = [0, 64], sizes = [8, 32], strides = [1, 1]} : vector<8x128xf32> to vector<8x32xf32>
    %cst_36 = arith.constant 2.000000e+00 : f32
    %100 = vector.broadcast %cst_36 : f32 to vector<8x32xf32>
    %101 = arith.mulf %100, %99 : vector<8x32xf32>
    %cst_37 = arith.constant 1.000000e+00 : f32
    %102 = vector.broadcast %cst_37 : f32 to vector<8x32xf32>
    %103 = arith.subf %101, %102 : vector<8x32xf32>
    %104 = arith.mulf %97, %58 : vector<8x32xf32>
    %105 = arith.mulf %96, %103 : vector<8x32xf32>
    %106 = arith.addf %104, %105 : vector<8x32xf32>
    %107 = math.tanh %106 : vector<8x32xf32>
    %108 = arith.mulf %98, %107 : vector<8x32xf32>
    %c8_38 = arith.constant 8 : index
    %c0_39 = arith.constant 0 : index
    %109 = vector.load %arg17[%c8_38, %c0_39] : memref<64x32xf32, #tpu.memory_space<vmem>>, vector<8x32xf32>
    tpu.vector_store %arg17[%c8_38, %c0_39], %108 {strides = array<i32>} : memref<64x32xf32, #tpu.memory_space<vmem>>, vector<8x32xf32>,
    %110 = arith.negf %86 : vector<8x128xf32>
    %111 = math.exp %110 : vector<8x128xf32>
    %cst_40 = arith.constant 1.000000e+00 : f32
    %112 = vector.broadcast %cst_40 : f32 to vector<8x128xf32>
    %113 = arith.addf %112, %111 : vector<8x128xf32>
    %114 = arith.divf %112, %113 : vector<8x128xf32>
    %115 = vector.extract_strided_slice %114 {offsets = [0, 0], sizes = [8, 32], strides = [1, 1]} : vector<8x128xf32> to vector<8x32xf32>
    %116 = vector.extract_strided_slice %114 {offsets = [0, 32], sizes = [8, 32], strides = [1, 1]} : vector<8x128xf32> to vector<8x32xf32>
    %117 = vector.extract_strided_slice %114 {offsets = [0, 96], sizes = [8, 32], strides = [1, 1]} : vector<8x128xf32> to vector<8x32xf32>
    %118 = vector.extract_strided_slice %114 {offsets = [0, 64], sizes = [8, 32], strides = [1, 1]} : vector<8x128xf32> to vector<8x32xf32>
    %cst_41 = arith.constant 2.000000e+00 : f32
    %119 = vector.broadcast %cst_41 : f32 to vector<8x32xf32>
    %120 = arith.mulf %119, %118 : vector<8x32xf32>
    %cst_42 = arith.constant 1.000000e+00 : f32
    %121 = vector.broadcast %cst_42 : f32 to vector<8x32xf32>
    %122 = arith.subf %120, %121 : vector<8x32xf32>
    %123 = arith.mulf %116, %77 : vector<8x32xf32>
    %124 = arith.mulf %115, %122 : vector<8x32xf32>
    %125 = arith.addf %123, %124 : vector<8x32xf32>
    %126 = math.tanh %125 : vector<8x32xf32>
    %127 = arith.mulf %117, %126 : vector<8x32xf32>
    %128 = arith.truncf %127 : vector<8x32xf32> to vector<8x32xbf16>
    %cst_43 = arith.constant dense<0.000000e+00> : vector<8x256xf32>
    %129 = tpu.matmul %128, %8, %cst_43 {dimension_numbers = #tpu.dot_dimension_numbers<[1], [0], [0], [1], [0, 0, 1, 1], [], []>} : vector<8x32xbf16>, vector<32x256xbf16>, vector<8x256xf32> -> vector<8x256xf32>
    %130 = arith.truncf %108 : vector<8x32xf32> to vector<8x32xbf16>
    %cst_44 = arith.constant dense<0.000000e+00> : vector<8x128xf32>
    %131 = tpu.matmul %130, %9, %cst_44 {dimension_numbers = #tpu.dot_dimension_numbers<[1], [0], [0], [1], [0, 0, 1, 1], [], []>} : vector<8x32xbf16>, vector<32x128xbf16>, vector<8x128xf32> -> vector<8x128xf32>
    %c24 = arith.constant 24 : index
    %c0_45 = arith.constant 0 : index
    %132 = vector.load %arg16[%c24, %c0_45] : memref<64x128xf32, #tpu.memory_space<vmem>>, vector<8x128xf32>
    %133 = vector.extract_strided_slice %129 {offsets = [0, 0], sizes = [8, 128], strides = [1, 1]} : vector<8x256xf32> to vector<8x128xf32>
    %134 = arith.addf %132, %133 : vector<8x128xf32>
    %135 = vector.extract_strided_slice %129 {offsets = [0, 128], sizes = [8, 128], strides = [1, 1]} : vector<8x256xf32> to vector<8x128xf32>
    %136 = arith.addf %135, %131 : vector<8x128xf32>
    %137 = vector.broadcast %7 : vector<1x128xf32> to vector<8x128xf32>
    %138 = arith.addf %136, %137 : vector<8x128xf32>
    %139 = arith.negf %138 : vector<8x128xf32>
    %140 = math.exp %139 : vector<8x128xf32>
    %cst_46 = arith.constant 1.000000e+00 : f32
    %141 = vector.broadcast %cst_46 : f32 to vector<8x128xf32>
    %142 = arith.addf %141, %140 : vector<8x128xf32>
    %143 = arith.divf %141, %142 : vector<8x128xf32>
    %144 = vector.extract_strided_slice %143 {offsets = [0, 0], sizes = [8, 32], strides = [1, 1]} : vector<8x128xf32> to vector<8x32xf32>
    %145 = vector.extract_strided_slice %143 {offsets = [0, 32], sizes = [8, 32], strides = [1, 1]} : vector<8x128xf32> to vector<8x32xf32>
    %146 = vector.extract_strided_slice %143 {offsets = [0, 96], sizes = [8, 32], strides = [1, 1]} : vector<8x128xf32> to vector<8x32xf32>
    %147 = vector.extract_strided_slice %143 {offsets = [0, 64], sizes = [8, 32], strides = [1, 1]} : vector<8x128xf32> to vector<8x32xf32>
    %cst_47 = arith.constant 2.000000e+00 : f32
    %148 = vector.broadcast %cst_47 : f32 to vector<8x32xf32>
    %149 = arith.mulf %148, %147 : vector<8x32xf32>
    %cst_48 = arith.constant 1.000000e+00 : f32
    %150 = vector.broadcast %cst_48 : f32 to vector<8x32xf32>
    %151 = arith.subf %149, %150 : vector<8x32xf32>
    %152 = arith.mulf %145, %106 : vector<8x32xf32>
    %153 = arith.mulf %144, %151 : vector<8x32xf32>
    %154 = arith.addf %152, %153 : vector<8x32xf32>
    %155 = math.tanh %154 : vector<8x32xf32>
    %156 = arith.mulf %146, %155 : vector<8x32xf32>
    %c16_49 = arith.constant 16 : index
    %c0_50 = arith.constant 0 : index
    %157 = vector.load %arg17[%c16_49, %c0_50] : memref<64x32xf32, #tpu.memory_space<vmem>>, vector<8x32xf32>
    tpu.vector_store %arg17[%c16_49, %c0_50], %156 {strides = array<i32>} : memref<64x32xf32, #tpu.memory_space<vmem>>, vector<8x32xf32>,
    %158 = arith.negf %134 : vector<8x128xf32>
    %159 = math.exp %158 : vector<8x128xf32>
    %cst_51 = arith.constant 1.000000e+00 : f32
    %160 = vector.broadcast %cst_51 : f32 to vector<8x128xf32>
    %161 = arith.addf %160, %159 : vector<8x128xf32>
    %162 = arith.divf %160, %161 : vector<8x128xf32>
    %163 = vector.extract_strided_slice %162 {offsets = [0, 0], sizes = [8, 32], strides = [1, 1]} : vector<8x128xf32> to vector<8x32xf32>
    %164 = vector.extract_strided_slice %162 {offsets = [0, 32], sizes = [8, 32], strides = [1, 1]} : vector<8x128xf32> to vector<8x32xf32>
    %165 = vector.extract_strided_slice %162 {offsets = [0, 96], sizes = [8, 32], strides = [1, 1]} : vector<8x128xf32> to vector<8x32xf32>
    %166 = vector.extract_strided_slice %162 {offsets = [0, 64], sizes = [8, 32], strides = [1, 1]} : vector<8x128xf32> to vector<8x32xf32>
    %cst_52 = arith.constant 2.000000e+00 : f32
    %167 = vector.broadcast %cst_52 : f32 to vector<8x32xf32>
    %168 = arith.mulf %167, %166 : vector<8x32xf32>
    %cst_53 = arith.constant 1.000000e+00 : f32
    %169 = vector.broadcast %cst_53 : f32 to vector<8x32xf32>
    %170 = arith.subf %168, %169 : vector<8x32xf32>
    %171 = arith.mulf %164, %125 : vector<8x32xf32>
    %172 = arith.mulf %163, %170 : vector<8x32xf32>
    %173 = arith.addf %171, %172 : vector<8x32xf32>
    %174 = math.tanh %173 : vector<8x32xf32>
    %175 = arith.mulf %165, %174 : vector<8x32xf32>
    %176 = arith.truncf %175 : vector<8x32xf32> to vector<8x32xbf16>
    %cst_54 = arith.constant dense<0.000000e+00> : vector<8x256xf32>
    %177 = tpu.matmul %176, %8, %cst_54 {dimension_numbers = #tpu.dot_dimension_numbers<[1], [0], [0], [1], [0, 0, 1, 1], [], []>} : vector<8x32xbf16>, vector<32x256xbf16>, vector<8x256xf32> -> vector<8x256xf32>
    %178 = arith.truncf %156 : vector<8x32xf32> to vector<8x32xbf16>
    %cst_55 = arith.constant dense<0.000000e+00> : vector<8x128xf32>
    %179 = tpu.matmul %178, %9, %cst_55 {dimension_numbers = #tpu.dot_dimension_numbers<[1], [0], [0], [1], [0, 0, 1, 1], [], []>} : vector<8x32xbf16>, vector<32x128xbf16>, vector<8x128xf32> -> vector<8x128xf32>
    %c32 = arith.constant 32 : index
    %c0_56 = arith.constant 0 : index
    %180 = vector.load %arg16[%c32, %c0_56] : memref<64x128xf32, #tpu.memory_space<vmem>>, vector<8x128xf32>
    %181 = vector.extract_strided_slice %177 {offsets = [0, 0], sizes = [8, 128], strides = [1, 1]} : vector<8x256xf32> to vector<8x128xf32>
    %182 = arith.addf %180, %181 : vector<8x128xf32>
    %183 = vector.extract_strided_slice %177 {offsets = [0, 128], sizes = [8, 128], strides = [1, 1]} : vector<8x256xf32> to vector<8x128xf32>
    %184 = arith.addf %183, %179 : vector<8x128xf32>
    %185 = vector.broadcast %7 : vector<1x128xf32> to vector<8x128xf32>
    %186 = arith.addf %184, %185 : vector<8x128xf32>
    %187 = arith.negf %186 : vector<8x128xf32>
    %188 = math.exp %187 : vector<8x128xf32>
    %cst_57 = arith.constant 1.000000e+00 : f32
    %189 = vector.broadcast %cst_57 : f32 to vector<8x128xf32>
    %190 = arith.addf %189, %188 : vector<8x128xf32>
    %191 = arith.divf %189, %190 : vector<8x128xf32>
    %192 = vector.extract_strided_slice %191 {offsets = [0, 0], sizes = [8, 32], strides = [1, 1]} : vector<8x128xf32> to vector<8x32xf32>
    %193 = vector.extract_strided_slice %191 {offsets = [0, 32], sizes = [8, 32], strides = [1, 1]} : vector<8x128xf32> to vector<8x32xf32>
    %194 = vector.extract_strided_slice %191 {offsets = [0, 96], sizes = [8, 32], strides = [1, 1]} : vector<8x128xf32> to vector<8x32xf32>
    %195 = vector.extract_strided_slice %191 {offsets = [0, 64], sizes = [8, 32], strides = [1, 1]} : vector<8x128xf32> to vector<8x32xf32>
    %cst_58 = arith.constant 2.000000e+00 : f32
    %196 = vector.broadcast %cst_58 : f32 to vector<8x32xf32>
    %197 = arith.mulf %196, %195 : vector<8x32xf32>
    %cst_59 = arith.constant 1.000000e+00 : f32
    %198 = vector.broadcast %cst_59 : f32 to vector<8x32xf32>
    %199 = arith.subf %197, %198 : vector<8x32xf32>
    %200 = arith.mulf %193, %154 : vector<8x32xf32>
    %201 = arith.mulf %192, %199 : vector<8x32xf32>
    %202 = arith.addf %200, %201 : vector<8x32xf32>
    %203 = math.tanh %202 : vector<8x32xf32>
    %204 = arith.mulf %194, %203 : vector<8x32xf32>
    %c24_60 = arith.constant 24 : index
    %c0_61 = arith.constant 0 : index
    %205 = vector.load %arg17[%c24_60, %c0_61] : memref<64x32xf32, #tpu.memory_space<vmem>>, vector<8x32xf32>
    tpu.vector_store %arg17[%c24_60, %c0_61], %204 {strides = array<i32>} : memref<64x32xf32, #tpu.memory_space<vmem>>, vector<8x32xf32>,
    %206 = arith.negf %182 : vector<8x128xf32>
    %207 = math.exp %206 : vector<8x128xf32>
    %cst_62 = arith.constant 1.000000e+00 : f32
    %208 = vector.broadcast %cst_62 : f32 to vector<8x128xf32>
    %209 = arith.addf %208, %207 : vector<8x128xf32>
    %210 = arith.divf %208, %209 : vector<8x128xf32>
    %211 = vector.extract_strided_slice %210 {offsets = [0, 0], sizes = [8, 32], strides = [1, 1]} : vector<8x128xf32> to vector<8x32xf32>
    %212 = vector.extract_strided_slice %210 {offsets = [0, 32], sizes = [8, 32], strides = [1, 1]} : vector<8x128xf32> to vector<8x32xf32>
    %213 = vector.extract_strided_slice %210 {offsets = [0, 96], sizes = [8, 32], strides = [1, 1]} : vector<8x128xf32> to vector<8x32xf32>
    %214 = vector.extract_strided_slice %210 {offsets = [0, 64], sizes = [8, 32], strides = [1, 1]} : vector<8x128xf32> to vector<8x32xf32>
    %cst_63 = arith.constant 2.000000e+00 : f32
    %215 = vector.broadcast %cst_63 : f32 to vector<8x32xf32>
    %216 = arith.mulf %215, %214 : vector<8x32xf32>
    %cst_64 = arith.constant 1.000000e+00 : f32
    %217 = vector.broadcast %cst_64 : f32 to vector<8x32xf32>
    %218 = arith.subf %216, %217 : vector<8x32xf32>
    %219 = arith.mulf %212, %173 : vector<8x32xf32>
    %220 = arith.mulf %211, %218 : vector<8x32xf32>
    %221 = arith.addf %219, %220 : vector<8x32xf32>
    %222 = math.tanh %221 : vector<8x32xf32>
    %223 = arith.mulf %213, %222 : vector<8x32xf32>
    %224 = arith.truncf %223 : vector<8x32xf32> to vector<8x32xbf16>
    %cst_65 = arith.constant dense<0.000000e+00> : vector<8x256xf32>
    %225 = tpu.matmul %224, %8, %cst_65 {dimension_numbers = #tpu.dot_dimension_numbers<[1], [0], [0], [1], [0, 0, 1, 1], [], []>} : vector<8x32xbf16>, vector<32x256xbf16>, vector<8x256xf32> -> vector<8x256xf32>
    %226 = arith.truncf %204 : vector<8x32xf32> to vector<8x32xbf16>
    %cst_66 = arith.constant dense<0.000000e+00> : vector<8x128xf32>
    %227 = tpu.matmul %226, %9, %cst_66 {dimension_numbers = #tpu.dot_dimension_numbers<[1], [0], [0], [1], [0, 0, 1, 1], [], []>} : vector<8x32xbf16>, vector<32x128xbf16>, vector<8x128xf32> -> vector<8x128xf32>
    %c40 = arith.constant 40 : index
    %c0_67 = arith.constant 0 : index
    %228 = vector.load %arg16[%c40, %c0_67] : memref<64x128xf32, #tpu.memory_space<vmem>>, vector<8x128xf32>
    %229 = vector.extract_strided_slice %225 {offsets = [0, 0], sizes = [8, 128], strides = [1, 1]} : vector<8x256xf32> to vector<8x128xf32>
    %230 = arith.addf %228, %229 : vector<8x128xf32>
    %231 = vector.extract_strided_slice %225 {offsets = [0, 128], sizes = [8, 128], strides = [1, 1]} : vector<8x256xf32> to vector<8x128xf32>
    %232 = arith.addf %231, %227 : vector<8x128xf32>
    %233 = vector.broadcast %7 : vector<1x128xf32> to vector<8x128xf32>
    %234 = arith.addf %232, %233 : vector<8x128xf32>
    %235 = arith.negf %234 : vector<8x128xf32>
    %236 = math.exp %235 : vector<8x128xf32>
    %cst_68 = arith.constant 1.000000e+00 : f32
    %237 = vector.broadcast %cst_68 : f32 to vector<8x128xf32>
    %238 = arith.addf %237, %236 : vector<8x128xf32>
    %239 = arith.divf %237, %238 : vector<8x128xf32>
    %240 = vector.extract_strided_slice %239 {offsets = [0, 0], sizes = [8, 32], strides = [1, 1]} : vector<8x128xf32> to vector<8x32xf32>
    %241 = vector.extract_strided_slice %239 {offsets = [0, 32], sizes = [8, 32], strides = [1, 1]} : vector<8x128xf32> to vector<8x32xf32>
    %242 = vector.extract_strided_slice %239 {offsets = [0, 96], sizes = [8, 32], strides = [1, 1]} : vector<8x128xf32> to vector<8x32xf32>
    %243 = vector.extract_strided_slice %239 {offsets = [0, 64], sizes = [8, 32], strides = [1, 1]} : vector<8x128xf32> to vector<8x32xf32>
    %cst_69 = arith.constant 2.000000e+00 : f32
    %244 = vector.broadcast %cst_69 : f32 to vector<8x32xf32>
    %245 = arith.mulf %244, %243 : vector<8x32xf32>
    %cst_70 = arith.constant 1.000000e+00 : f32
    %246 = vector.broadcast %cst_70 : f32 to vector<8x32xf32>
    %247 = arith.subf %245, %246 : vector<8x32xf32>
    %248 = arith.mulf %241, %202 : vector<8x32xf32>
    %249 = arith.mulf %240, %247 : vector<8x32xf32>
    %250 = arith.addf %248, %249 : vector<8x32xf32>
    %251 = math.tanh %250 : vector<8x32xf32>
    %252 = arith.mulf %242, %251 : vector<8x32xf32>
    %c32_71 = arith.constant 32 : index
    %c0_72 = arith.constant 0 : index
    %253 = vector.load %arg17[%c32_71, %c0_72] : memref<64x32xf32, #tpu.memory_space<vmem>>, vector<8x32xf32>
    tpu.vector_store %arg17[%c32_71, %c0_72], %252 {strides = array<i32>} : memref<64x32xf32, #tpu.memory_space<vmem>>, vector<8x32xf32>,
    %254 = arith.negf %230 : vector<8x128xf32>
    %255 = math.exp %254 : vector<8x128xf32>
    %cst_73 = arith.constant 1.000000e+00 : f32
    %256 = vector.broadcast %cst_73 : f32 to vector<8x128xf32>
    %257 = arith.addf %256, %255 : vector<8x128xf32>
    %258 = arith.divf %256, %257 : vector<8x128xf32>
    %259 = vector.extract_strided_slice %258 {offsets = [0, 0], sizes = [8, 32], strides = [1, 1]} : vector<8x128xf32> to vector<8x32xf32>
    %260 = vector.extract_strided_slice %258 {offsets = [0, 32], sizes = [8, 32], strides = [1, 1]} : vector<8x128xf32> to vector<8x32xf32>
    %261 = vector.extract_strided_slice %258 {offsets = [0, 96], sizes = [8, 32], strides = [1, 1]} : vector<8x128xf32> to vector<8x32xf32>
    %262 = vector.extract_strided_slice %258 {offsets = [0, 64], sizes = [8, 32], strides = [1, 1]} : vector<8x128xf32> to vector<8x32xf32>
    %cst_74 = arith.constant 2.000000e+00 : f32
    %263 = vector.broadcast %cst_74 : f32 to vector<8x32xf32>
    %264 = arith.mulf %263, %262 : vector<8x32xf32>
    %cst_75 = arith.constant 1.000000e+00 : f32
    %265 = vector.broadcast %cst_75 : f32 to vector<8x32xf32>
    %266 = arith.subf %264, %265 : vector<8x32xf32>
    %267 = arith.mulf %260, %221 : vector<8x32xf32>
    %268 = arith.mulf %259, %266 : vector<8x32xf32>
    %269 = arith.addf %267, %268 : vector<8x32xf32>
    %270 = math.tanh %269 : vector<8x32xf32>
    %271 = arith.mulf %261, %270 : vector<8x32xf32>
    %272 = arith.truncf %271 : vector<8x32xf32> to vector<8x32xbf16>
    %cst_76 = arith.constant dense<0.000000e+00> : vector<8x256xf32>
    %273 = tpu.matmul %272, %8, %cst_76 {dimension_numbers = #tpu.dot_dimension_numbers<[1], [0], [0], [1], [0, 0, 1, 1], [], []>} : vector<8x32xbf16>, vector<32x256xbf16>, vector<8x256xf32> -> vector<8x256xf32>
    %274 = arith.truncf %252 : vector<8x32xf32> to vector<8x32xbf16>
    %cst_77 = arith.constant dense<0.000000e+00> : vector<8x128xf32>
    %275 = tpu.matmul %274, %9, %cst_77 {dimension_numbers = #tpu.dot_dimension_numbers<[1], [0], [0], [1], [0, 0, 1, 1], [], []>} : vector<8x32xbf16>, vector<32x128xbf16>, vector<8x128xf32> -> vector<8x128xf32>
    %c48 = arith.constant 48 : index
    %c0_78 = arith.constant 0 : index
    %276 = vector.load %arg16[%c48, %c0_78] : memref<64x128xf32, #tpu.memory_space<vmem>>, vector<8x128xf32>
    %277 = vector.extract_strided_slice %273 {offsets = [0, 0], sizes = [8, 128], strides = [1, 1]} : vector<8x256xf32> to vector<8x128xf32>
    %278 = arith.addf %276, %277 : vector<8x128xf32>
    %279 = vector.extract_strided_slice %273 {offsets = [0, 128], sizes = [8, 128], strides = [1, 1]} : vector<8x256xf32> to vector<8x128xf32>
    %280 = arith.addf %279, %275 : vector<8x128xf32>
    %281 = vector.broadcast %7 : vector<1x128xf32> to vector<8x128xf32>
    %282 = arith.addf %280, %281 : vector<8x128xf32>
    %283 = arith.negf %282 : vector<8x128xf32>
    %284 = math.exp %283 : vector<8x128xf32>
    %cst_79 = arith.constant 1.000000e+00 : f32
    %285 = vector.broadcast %cst_79 : f32 to vector<8x128xf32>
    %286 = arith.addf %285, %284 : vector<8x128xf32>
    %287 = arith.divf %285, %286 : vector<8x128xf32>
    %288 = vector.extract_strided_slice %287 {offsets = [0, 0], sizes = [8, 32], strides = [1, 1]} : vector<8x128xf32> to vector<8x32xf32>
    %289 = vector.extract_strided_slice %287 {offsets = [0, 32], sizes = [8, 32], strides = [1, 1]} : vector<8x128xf32> to vector<8x32xf32>
    %290 = vector.extract_strided_slice %287 {offsets = [0, 96], sizes = [8, 32], strides = [1, 1]} : vector<8x128xf32> to vector<8x32xf32>
    %291 = vector.extract_strided_slice %287 {offsets = [0, 64], sizes = [8, 32], strides = [1, 1]} : vector<8x128xf32> to vector<8x32xf32>
    %cst_80 = arith.constant 2.000000e+00 : f32
    %292 = vector.broadcast %cst_80 : f32 to vector<8x32xf32>
    %293 = arith.mulf %292, %291 : vector<8x32xf32>
    %cst_81 = arith.constant 1.000000e+00 : f32
    %294 = vector.broadcast %cst_81 : f32 to vector<8x32xf32>
    %295 = arith.subf %293, %294 : vector<8x32xf32>
    %296 = arith.mulf %289, %250 : vector<8x32xf32>
    %297 = arith.mulf %288, %295 : vector<8x32xf32>
    %298 = arith.addf %296, %297 : vector<8x32xf32>
    %299 = math.tanh %298 : vector<8x32xf32>
    %300 = arith.mulf %290, %299 : vector<8x32xf32>
    %c40_82 = arith.constant 40 : index
    %c0_83 = arith.constant 0 : index
    %301 = vector.load %arg17[%c40_82, %c0_83] : memref<64x32xf32, #tpu.memory_space<vmem>>, vector<8x32xf32>
    tpu.vector_store %arg17[%c40_82, %c0_83], %300 {strides = array<i32>} : memref<64x32xf32, #tpu.memory_space<vmem>>, vector<8x32xf32>,
    %302 = arith.negf %278 : vector<8x128xf32>
    %303 = math.exp %302 : vector<8x128xf32>
    %cst_84 = arith.constant 1.000000e+00 : f32
    %304 = vector.broadcast %cst_84 : f32 to vector<8x128xf32>
    %305 = arith.addf %304, %303 : vector<8x128xf32>
    %306 = arith.divf %304, %305 : vector<8x128xf32>
    %307 = vector.extract_strided_slice %306 {offsets = [0, 0], sizes = [8, 32], strides = [1, 1]} : vector<8x128xf32> to vector<8x32xf32>
    %308 = vector.extract_strided_slice %306 {offsets = [0, 32], sizes = [8, 32], strides = [1, 1]} : vector<8x128xf32> to vector<8x32xf32>
    %309 = vector.extract_strided_slice %306 {offsets = [0, 96], sizes = [8, 32], strides = [1, 1]} : vector<8x128xf32> to vector<8x32xf32>
    %310 = vector.extract_strided_slice %306 {offsets = [0, 64], sizes = [8, 32], strides = [1, 1]} : vector<8x128xf32> to vector<8x32xf32>
    %cst_85 = arith.constant 2.000000e+00 : f32
    %311 = vector.broadcast %cst_85 : f32 to vector<8x32xf32>
    %312 = arith.mulf %311, %310 : vector<8x32xf32>
    %cst_86 = arith.constant 1.000000e+00 : f32
    %313 = vector.broadcast %cst_86 : f32 to vector<8x32xf32>
    %314 = arith.subf %312, %313 : vector<8x32xf32>
    %315 = arith.mulf %308, %269 : vector<8x32xf32>
    %316 = arith.mulf %307, %314 : vector<8x32xf32>
    %317 = arith.addf %315, %316 : vector<8x32xf32>
    %318 = math.tanh %317 : vector<8x32xf32>
    %319 = arith.mulf %309, %318 : vector<8x32xf32>
    %320 = arith.truncf %319 : vector<8x32xf32> to vector<8x32xbf16>
    %cst_87 = arith.constant dense<0.000000e+00> : vector<8x256xf32>
    %321 = tpu.matmul %320, %8, %cst_87 {dimension_numbers = #tpu.dot_dimension_numbers<[1], [0], [0], [1], [0, 0, 1, 1], [], []>} : vector<8x32xbf16>, vector<32x256xbf16>, vector<8x256xf32> -> vector<8x256xf32>
    %322 = arith.truncf %300 : vector<8x32xf32> to vector<8x32xbf16>
    %cst_88 = arith.constant dense<0.000000e+00> : vector<8x128xf32>
    %323 = tpu.matmul %322, %9, %cst_88 {dimension_numbers = #tpu.dot_dimension_numbers<[1], [0], [0], [1], [0, 0, 1, 1], [], []>} : vector<8x32xbf16>, vector<32x128xbf16>, vector<8x128xf32> -> vector<8x128xf32>
    %c56 = arith.constant 56 : index
    %c0_89 = arith.constant 0 : index
    %324 = vector.load %arg16[%c56, %c0_89] : memref<64x128xf32, #tpu.memory_space<vmem>>, vector<8x128xf32>
    %325 = vector.extract_strided_slice %321 {offsets = [0, 0], sizes = [8, 128], strides = [1, 1]} : vector<8x256xf32> to vector<8x128xf32>
    %326 = arith.addf %324, %325 : vector<8x128xf32>
    %327 = vector.extract_strided_slice %321 {offsets = [0, 128], sizes = [8, 128], strides = [1, 1]} : vector<8x256xf32> to vector<8x128xf32>
    %328 = arith.addf %327, %323 : vector<8x128xf32>
    %329 = vector.broadcast %7 : vector<1x128xf32> to vector<8x128xf32>
    %330 = arith.addf %328, %329 : vector<8x128xf32>
    %331 = arith.negf %330 : vector<8x128xf32>
    %332 = math.exp %331 : vector<8x128xf32>
    %cst_90 = arith.constant 1.000000e+00 : f32
    %333 = vector.broadcast %cst_90 : f32 to vector<8x128xf32>
    %334 = arith.addf %333, %332 : vector<8x128xf32>
    %335 = arith.divf %333, %334 : vector<8x128xf32>
    %336 = vector.extract_strided_slice %335 {offsets = [0, 0], sizes = [8, 32], strides = [1, 1]} : vector<8x128xf32> to vector<8x32xf32>
    %337 = vector.extract_strided_slice %335 {offsets = [0, 32], sizes = [8, 32], strides = [1, 1]} : vector<8x128xf32> to vector<8x32xf32>
    %338 = vector.extract_strided_slice %335 {offsets = [0, 96], sizes = [8, 32], strides = [1, 1]} : vector<8x128xf32> to vector<8x32xf32>
    %339 = vector.extract_strided_slice %335 {offsets = [0, 64], sizes = [8, 32], strides = [1, 1]} : vector<8x128xf32> to vector<8x32xf32>
    %cst_91 = arith.constant 2.000000e+00 : f32
    %340 = vector.broadcast %cst_91 : f32 to vector<8x32xf32>
    %341 = arith.mulf %340, %339 : vector<8x32xf32>
    %cst_92 = arith.constant 1.000000e+00 : f32
    %342 = vector.broadcast %cst_92 : f32 to vector<8x32xf32>
    %343 = arith.subf %341, %342 : vector<8x32xf32>
    %344 = arith.mulf %337, %298 : vector<8x32xf32>
    %345 = arith.mulf %336, %343 : vector<8x32xf32>
    %346 = arith.addf %344, %345 : vector<8x32xf32>
    %347 = math.tanh %346 : vector<8x32xf32>
    %348 = arith.mulf %338, %347 : vector<8x32xf32>
    %c48_93 = arith.constant 48 : index
    %c0_94 = arith.constant 0 : index
    %349 = vector.load %arg17[%c48_93, %c0_94] : memref<64x32xf32, #tpu.memory_space<vmem>>, vector<8x32xf32>
    tpu.vector_store %arg17[%c48_93, %c0_94], %348 {strides = array<i32>} : memref<64x32xf32, #tpu.memory_space<vmem>>, vector<8x32xf32>,
    %350 = arith.negf %326 : vector<8x128xf32>
    %351 = math.exp %350 : vector<8x128xf32>
    %cst_95 = arith.constant 1.000000e+00 : f32
    %352 = vector.broadcast %cst_95 : f32 to vector<8x128xf32>
    %353 = arith.addf %352, %351 : vector<8x128xf32>
    %354 = arith.divf %352, %353 : vector<8x128xf32>
    %355 = vector.extract_strided_slice %354 {offsets = [0, 0], sizes = [8, 32], strides = [1, 1]} : vector<8x128xf32> to vector<8x32xf32>
    %356 = vector.extract_strided_slice %354 {offsets = [0, 32], sizes = [8, 32], strides = [1, 1]} : vector<8x128xf32> to vector<8x32xf32>
    %357 = vector.extract_strided_slice %354 {offsets = [0, 96], sizes = [8, 32], strides = [1, 1]} : vector<8x128xf32> to vector<8x32xf32>
    %358 = vector.extract_strided_slice %354 {offsets = [0, 64], sizes = [8, 32], strides = [1, 1]} : vector<8x128xf32> to vector<8x32xf32>
    %cst_96 = arith.constant 2.000000e+00 : f32
    %359 = vector.broadcast %cst_96 : f32 to vector<8x32xf32>
    %360 = arith.mulf %359, %358 : vector<8x32xf32>
    %cst_97 = arith.constant 1.000000e+00 : f32
    %361 = vector.broadcast %cst_97 : f32 to vector<8x32xf32>
    %362 = arith.subf %360, %361 : vector<8x32xf32>
    %363 = arith.mulf %356, %317 : vector<8x32xf32>
    %364 = arith.mulf %355, %362 : vector<8x32xf32>
    %365 = arith.addf %363, %364 : vector<8x32xf32>
    %366 = math.tanh %365 : vector<8x32xf32>
    %367 = arith.mulf %357, %366 : vector<8x32xf32>
    %368 = arith.truncf %367 : vector<8x32xf32> to vector<8x32xbf16>
    %cst_98 = arith.constant dense<0.000000e+00> : vector<8x256xf32>
    %369 = tpu.matmul %368, %8, %cst_98 {dimension_numbers = #tpu.dot_dimension_numbers<[1], [0], [0], [1], [0, 0, 1, 1], [], []>} : vector<8x32xbf16>, vector<32x256xbf16>, vector<8x256xf32> -> vector<8x256xf32>
    %370 = arith.truncf %348 : vector<8x32xf32> to vector<8x32xbf16>
    %cst_99 = arith.constant dense<0.000000e+00> : vector<8x128xf32>
    %371 = tpu.matmul %370, %9, %cst_99 {dimension_numbers = #tpu.dot_dimension_numbers<[1], [0], [0], [1], [0, 0, 1, 1], [], []>} : vector<8x32xbf16>, vector<32x128xbf16>, vector<8x128xf32> -> vector<8x128xf32>
    %372 = vector.extract_strided_slice %369 {offsets = [0, 128], sizes = [8, 128], strides = [1, 1]} : vector<8x256xf32> to vector<8x128xf32>
    %373 = arith.addf %372, %371 : vector<8x128xf32>
    %374 = vector.broadcast %7 : vector<1x128xf32> to vector<8x128xf32>
    %375 = arith.addf %373, %374 : vector<8x128xf32>
    %376 = arith.negf %375 : vector<8x128xf32>
    %377 = math.exp %376 : vector<8x128xf32>
    %cst_100 = arith.constant 1.000000e+00 : f32
    %378 = vector.broadcast %cst_100 : f32 to vector<8x128xf32>
    %379 = arith.addf %378, %377 : vector<8x128xf32>
    %380 = arith.divf %378, %379 : vector<8x128xf32>
    %381 = vector.extract_strided_slice %380 {offsets = [0, 0], sizes = [8, 32], strides = [1, 1]} : vector<8x128xf32> to vector<8x32xf32>
    %382 = vector.extract_strided_slice %380 {offsets = [0, 32], sizes = [8, 32], strides = [1, 1]} : vector<8x128xf32> to vector<8x32xf32>
    %383 = vector.extract_strided_slice %380 {offsets = [0, 96], sizes = [8, 32], strides = [1, 1]} : vector<8x128xf32> to vector<8x32xf32>
    %384 = vector.extract_strided_slice %380 {offsets = [0, 64], sizes = [8, 32], strides = [1, 1]} : vector<8x128xf32> to vector<8x32xf32>
    %cst_101 = arith.constant 2.000000e+00 : f32
    %385 = vector.broadcast %cst_101 : f32 to vector<8x32xf32>
    %386 = arith.mulf %385, %384 : vector<8x32xf32>
    %cst_102 = arith.constant 1.000000e+00 : f32
    %387 = vector.broadcast %cst_102 : f32 to vector<8x32xf32>
    %388 = arith.subf %386, %387 : vector<8x32xf32>
    %389 = arith.mulf %382, %346 : vector<8x32xf32>
    %390 = arith.mulf %381, %388 : vector<8x32xf32>
    %391 = arith.addf %389, %390 : vector<8x32xf32>
    %392 = math.tanh %391 : vector<8x32xf32>
    %393 = arith.mulf %383, %392 : vector<8x32xf32>
    %c56_103 = arith.constant 56 : index
    %c0_104 = arith.constant 0 : index
    %394 = vector.load %arg17[%c56_103, %c0_104] : memref<64x32xf32, #tpu.memory_space<vmem>>, vector<8x32xf32>
    tpu.vector_store %arg17[%c56_103, %c0_104], %393 {strides = array<i32>} : memref<64x32xf32, #tpu.memory_space<vmem>>, vector<8x32xf32>,
    %c0_105 = arith.constant 0 : index
    %c0_106 = arith.constant 0 : index
    %395 = vector.load %arg17[%c0_105, %c0_106] : memref<64x32xf32, #tpu.memory_space<vmem>>, vector<64x32xf32>
    %396 = arith.truncf %393 : vector<8x32xf32> to vector<8x32xbf16>
    %c0_107 = arith.constant 0 : index
    %c0_108 = arith.constant 0 : index
    %397 = vector.load %arg6[%c0_107, %c0_108] : memref<32x32xbf16, #tpu.memory_space<vmem>>, vector<32x32xbf16>
    %cst_109 = arith.constant dense<0.000000e+00> : vector<8x32xf32>
    %398 = tpu.matmul %396, %397, %cst_109 {dimension_numbers = #tpu.dot_dimension_numbers<[1], [0], [0], [1], [0, 0, 1, 1], [], []>} : vector<8x32xbf16>, vector<32x32xbf16>, vector<8x32xf32> -> vector<8x32xf32>
    %c0_110 = arith.constant 0 : index
    %c0_111 = arith.constant 0 : index
    %399 = vector.load %arg7[%c0_110, %c0_111] : memref<1x32xf32, #tpu.memory_space<vmem>>, vector<1x32xf32>
    %400 = vector.broadcast %399 : vector<1x32xf32> to vector<8x32xf32>
    %401 = arith.addf %398, %400 : vector<8x32xf32>
    %402 = arith.truncf %395 : vector<64x32xf32> to vector<64x32xbf16>
    %c0_112 = arith.constant 0 : index
    %c0_113 = arith.constant 0 : index
    %403 = vector.load %arg8[%c0_112, %c0_113] : memref<32x32xbf16, #tpu.memory_space<vmem>>, vector<32x32xbf16>
    %cst_114 = arith.constant dense<0.000000e+00> : vector<64x32xf32>
    %404 = tpu.matmul %402, %403, %cst_114 {dimension_numbers = #tpu.dot_dimension_numbers<[1], [0], [0], [1], [0, 0, 1, 1], [], []>} : vector<64x32xbf16>, vector<32x32xbf16>, vector<64x32xf32> -> vector<64x32xf32>
    %c0_115 = arith.constant 0 : index
    %c0_116 = arith.constant 0 : index
    %405 = vector.load %arg9[%c0_115, %c0_116] : memref<1x32xf32, #tpu.memory_space<vmem>>, vector<1x32xf32>
    %406 = vector.broadcast %405 : vector<1x32xf32> to vector<64x32xf32>
    %407 = arith.addf %404, %406 : vector<64x32xf32>
    %408 = tpu.concatenate %401, %401, %401, %401, %401, %401, %401, %401 in 0 : vector<8x32xf32>, vector<8x32xf32>, vector<8x32xf32>, vector<8x32xf32>, vector<8x32xf32>, vector<8x32xf32>, vector<8x32xf32>, vector<8x32xf32> -> vector<64x32xf32>
    %409 = arith.addf %407, %408 : vector<64x32xf32>
    %410 = math.tanh %409 : vector<64x32xf32>
    %c0_117 = arith.constant 0 : index
    %c0_118 = arith.constant 0 : index
    %411 = vector.load %arg10[%c0_117, %c0_118] : memref<1x32xf32, #tpu.memory_space<vmem>>, vector<1x32xf32>
    %412 = vector.broadcast %411 : vector<1x32xf32> to vector<64x32xf32>
    %413 = arith.mulf %410, %412 : vector<64x32xf32>
    %cst_119 = arith.constant dense<0.000000e+00> : vector<64xf32>
    %414 = vector.multi_reduction <add>, %413, %cst_119 [1] : vector<64x32xf32> to vector<64xf32>
    %415 = vector.shape_cast %414 : vector<64xf32> to vector<64x1xf32>
    %c0_120 = arith.constant 0 : index
    %c0_121 = arith.constant 0 : index
    %416 = vector.load %arg11[%c0_120, %c0_121] : memref<1x1xf32, #tpu.memory_space<vmem>>, vector<1x1xf32>
    %417 = vector.broadcast %416 : vector<1x1xf32> to vector<64x1xf32>
    %418 = arith.addf %415, %417 : vector<64x1xf32>
    %419 = vector.extract_strided_slice %418 {offsets = [0, 0], sizes = [8, 1], strides = [1, 1]} : vector<64x1xf32> to vector<8x1xf32>
    %420 = vector.extract_strided_slice %418 {offsets = [8, 0], sizes = [8, 1], strides = [1, 1]} : vector<64x1xf32> to vector<8x1xf32>
    %421 = arith.maximumf %419, %420 : vector<8x1xf32>
    %422 = vector.extract_strided_slice %418 {offsets = [16, 0], sizes = [8, 1], strides = [1, 1]} : vector<64x1xf32> to vector<8x1xf32>
    %423 = arith.maximumf %421, %422 : vector<8x1xf32>
    %424 = vector.extract_strided_slice %418 {offsets = [24, 0], sizes = [8, 1], strides = [1, 1]} : vector<64x1xf32> to vector<8x1xf32>
    %425 = arith.maximumf %423, %424 : vector<8x1xf32>
    %426 = vector.extract_strided_slice %418 {offsets = [32, 0], sizes = [8, 1], strides = [1, 1]} : vector<64x1xf32> to vector<8x1xf32>
    %427 = arith.maximumf %425, %426 : vector<8x1xf32>
    %428 = vector.extract_strided_slice %418 {offsets = [40, 0], sizes = [8, 1], strides = [1, 1]} : vector<64x1xf32> to vector<8x1xf32>
    %429 = arith.maximumf %427, %428 : vector<8x1xf32>
    %430 = vector.extract_strided_slice %418 {offsets = [48, 0], sizes = [8, 1], strides = [1, 1]} : vector<64x1xf32> to vector<8x1xf32>
    %431 = arith.maximumf %429, %430 : vector<8x1xf32>
    %432 = vector.extract_strided_slice %418 {offsets = [56, 0], sizes = [8, 1], strides = [1, 1]} : vector<64x1xf32> to vector<8x1xf32>
    %433 = arith.maximumf %431, %432 : vector<8x1xf32>
    %434 = tpu.concatenate %433, %433, %433, %433, %433, %433, %433, %433 in 0 : vector<8x1xf32>, vector<8x1xf32>, vector<8x1xf32>, vector<8x1xf32>, vector<8x1xf32>, vector<8x1xf32>, vector<8x1xf32>, vector<8x1xf32> -> vector<64x1xf32>
    %435 = arith.subf %418, %434 : vector<64x1xf32>
    %436 = math.exp %435 : vector<64x1xf32>
    %437 = vector.extract_strided_slice %436 {offsets = [0, 0], sizes = [8, 1], strides = [1, 1]} : vector<64x1xf32> to vector<8x1xf32>
    %438 = vector.extract_strided_slice %436 {offsets = [8, 0], sizes = [8, 1], strides = [1, 1]} : vector<64x1xf32> to vector<8x1xf32>
    %439 = arith.addf %437, %438 : vector<8x1xf32>
    %440 = vector.extract_strided_slice %436 {offsets = [16, 0], sizes = [8, 1], strides = [1, 1]} : vector<64x1xf32> to vector<8x1xf32>
    %441 = arith.addf %439, %440 : vector<8x1xf32>
    %442 = vector.extract_strided_slice %436 {offsets = [24, 0], sizes = [8, 1], strides = [1, 1]} : vector<64x1xf32> to vector<8x1xf32>
    %443 = arith.addf %441, %442 : vector<8x1xf32>
    %444 = vector.extract_strided_slice %436 {offsets = [32, 0], sizes = [8, 1], strides = [1, 1]} : vector<64x1xf32> to vector<8x1xf32>
    %445 = arith.addf %443, %444 : vector<8x1xf32>
    %446 = vector.extract_strided_slice %436 {offsets = [40, 0], sizes = [8, 1], strides = [1, 1]} : vector<64x1xf32> to vector<8x1xf32>
    %447 = arith.addf %445, %446 : vector<8x1xf32>
    %448 = vector.extract_strided_slice %436 {offsets = [48, 0], sizes = [8, 1], strides = [1, 1]} : vector<64x1xf32> to vector<8x1xf32>
    %449 = arith.addf %447, %448 : vector<8x1xf32>
    %450 = vector.extract_strided_slice %436 {offsets = [56, 0], sizes = [8, 1], strides = [1, 1]} : vector<64x1xf32> to vector<8x1xf32>
    %451 = arith.addf %449, %450 : vector<8x1xf32>
    %452 = tpu.reciprocal %451 : vector<8x1xf32> -> vector<8x1xf32>
    %453 = tpu.concatenate %452, %452, %452, %452, %452, %452, %452, %452 in 0 : vector<8x1xf32>, vector<8x1xf32>, vector<8x1xf32>, vector<8x1xf32>, vector<8x1xf32>, vector<8x1xf32>, vector<8x1xf32>, vector<8x1xf32> -> vector<64x1xf32>
    %454 = arith.mulf %436, %453 : vector<64x1xf32>
    %455 = vector.extract_strided_slice %454 {offsets = [0, 0], sizes = [8, 1], strides = [1, 1]} : vector<64x1xf32> to vector<8x1xf32>
    %456 = vector.extract_strided_slice %454 {offsets = [8, 0], sizes = [8, 1], strides = [1, 1]} : vector<64x1xf32> to vector<8x1xf32>
    %457 = vector.extract_strided_slice %454 {offsets = [16, 0], sizes = [8, 1], strides = [1, 1]} : vector<64x1xf32> to vector<8x1xf32>
    %458 = vector.extract_strided_slice %454 {offsets = [24, 0], sizes = [8, 1], strides = [1, 1]} : vector<64x1xf32> to vector<8x1xf32>
    %459 = vector.extract_strided_slice %454 {offsets = [32, 0], sizes = [8, 1], strides = [1, 1]} : vector<64x1xf32> to vector<8x1xf32>
    %460 = vector.extract_strided_slice %454 {offsets = [40, 0], sizes = [8, 1], strides = [1, 1]} : vector<64x1xf32> to vector<8x1xf32>
    %461 = vector.extract_strided_slice %454 {offsets = [48, 0], sizes = [8, 1], strides = [1, 1]} : vector<64x1xf32> to vector<8x1xf32>
    %462 = vector.extract_strided_slice %454 {offsets = [56, 0], sizes = [8, 1], strides = [1, 1]} : vector<64x1xf32> to vector<8x1xf32>
    %463 = tpu.concatenate %455, %456, %457, %458, %459, %460, %461, %462 in 1 : vector<8x1xf32>, vector<8x1xf32>, vector<8x1xf32>, vector<8x1xf32>, vector<8x1xf32>, vector<8x1xf32>, vector<8x1xf32>, vector<8x1xf32> -> vector<8x8xf32>
    %c0_122 = arith.constant 0 : index
    %c0_123 = arith.constant 0 : index
    %464 = vector.load %arg15[%c0_122, %c0_123] : memref<8x8xf32, #tpu.memory_space<vmem>>, vector<8x8xf32>
    tpu.vector_store %arg15[%c0_122, %c0_123], %463 {strides = array<i32>} : memref<8x8xf32, #tpu.memory_space<vmem>>, vector<8x8xf32>,
    %465 = vector.broadcast %454 : vector<64x1xf32> to vector<64x32xf32>
    %466 = arith.mulf %465, %395 : vector<64x32xf32>
    %467 = vector.extract_strided_slice %466 {offsets = [0, 0], sizes = [8, 32], strides = [1, 1]} : vector<64x32xf32> to vector<8x32xf32>
    %468 = vector.extract_strided_slice %466 {offsets = [8, 0], sizes = [8, 32], strides = [1, 1]} : vector<64x32xf32> to vector<8x32xf32>
    %469 = arith.addf %467, %468 : vector<8x32xf32>
    %470 = vector.extract_strided_slice %466 {offsets = [16, 0], sizes = [8, 32], strides = [1, 1]} : vector<64x32xf32> to vector<8x32xf32>
    %471 = arith.addf %469, %470 : vector<8x32xf32>
    %472 = vector.extract_strided_slice %466 {offsets = [24, 0], sizes = [8, 32], strides = [1, 1]} : vector<64x32xf32> to vector<8x32xf32>
    %473 = arith.addf %471, %472 : vector<8x32xf32>
    %474 = vector.extract_strided_slice %466 {offsets = [32, 0], sizes = [8, 32], strides = [1, 1]} : vector<64x32xf32> to vector<8x32xf32>
    %475 = arith.addf %473, %474 : vector<8x32xf32>
    %476 = vector.extract_strided_slice %466 {offsets = [40, 0], sizes = [8, 32], strides = [1, 1]} : vector<64x32xf32> to vector<8x32xf32>
    %477 = arith.addf %475, %476 : vector<8x32xf32>
    %478 = vector.extract_strided_slice %466 {offsets = [48, 0], sizes = [8, 32], strides = [1, 1]} : vector<64x32xf32> to vector<8x32xf32>
    %479 = arith.addf %477, %478 : vector<8x32xf32>
    %480 = vector.extract_strided_slice %466 {offsets = [56, 0], sizes = [8, 32], strides = [1, 1]} : vector<64x32xf32> to vector<8x32xf32>
    %481 = arith.addf %479, %480 : vector<8x32xf32>
    %482 = arith.truncf %481 : vector<8x32xf32> to vector<8x32xbf16>
    %c0_124 = arith.constant 0 : index
    %c0_125 = arith.constant 0 : index
    %483 = vector.load %arg12[%c0_124, %c0_125] : memref<32x4xbf16, #tpu.memory_space<vmem>>, vector<32x4xbf16>
    %cst_126 = arith.constant dense<0.000000e+00> : vector<8x4xf32>
    %484 = tpu.matmul %482, %483, %cst_126 {dimension_numbers = #tpu.dot_dimension_numbers<[1], [0], [0], [1], [0, 0, 1, 1], [], []>} : vector<8x32xbf16>, vector<32x4xbf16>, vector<8x4xf32> -> vector<8x4xf32>
    %c0_127 = arith.constant 0 : index
    %c0_128 = arith.constant 0 : index
    %485 = vector.load %arg13[%c0_127, %c0_128] : memref<1x4xf32, #tpu.memory_space<vmem>>, vector<1x4xf32>
    %486 = vector.broadcast %485 : vector<1x4xf32> to vector<8x4xf32>
    %487 = arith.addf %484, %486 : vector<8x4xf32>
    %c0_129 = arith.constant 0 : index
    %c0_130 = arith.constant 0 : index
    %488 = vector.load %arg14[%c0_129, %c0_130] : memref<8x4xf32, #tpu.memory_space<vmem>>, vector<8x4xf32>
    tpu.vector_store %arg14[%c0_129, %c0_130], %487 {strides = array<i32>} : memref<8x4xf32, #tpu.memory_space<vmem>>, vector<8x4xf32>,
    return
  }
}

</mosaic_0001>

<llo_original>
// kernel: tpu_custom_call.1
$region0: #{tpu_custom_call.1}
  #allocation0 [shape = 'u32[]', space=smem, size = 0x4, offset = 0x4, fixed_abs, tag = 'smem constant byte address 0x4 - core index']
  #allocation1 [shape = 'u32[144,128]{1,0:T(1,128)}', space=vmem, size = 0x12000, scoped, tag = 'internal scratch']
  #allocation2 [shape = 'f32[64,128]{1,0:T(8,128)}', space=vmem, size = 0x8000, scoped, tag = 'scratch operand']
  #allocation3 [shape = 'f32[64,32]{1,0:T(8,128)}', space=vmem, size = 0x8000, scoped, tag = 'scratch operand']
  #allocation4 [shape = 'f32[1,1]{1,0:T(1,128)S(1)}', space=vmem, size = 0x200, scoped, tag = 'scoped memory for tpu_custom_call.1']
  %s0 = inlined_call_operand.vmem [shape: bf16[64,16], index: 0, kind: input, shape index: {}]
  %s1 = inlined_call_operand.hbm [shape: bf16[16,128], index: 1, kind: input, shape index: {}]
  %s2 = inlined_call_operand.hbm [shape: f32[1,128], index: 2, kind: input, shape index: {}]
  %s3 = inlined_call_operand.vmem [shape: bf16[32,256], index: 3, kind: input, shape index: {}]
  %s4 = inlined_call_operand.vmem [shape: bf16[32,128], index: 4, kind: input, shape index: {}]
  %s5 = inlined_call_operand.hbm [shape: f32[1,128], index: 5, kind: input, shape index: {}]
  %s6 = inlined_call_operand.vmem [shape: bf16[32,32], index: 6, kind: input, shape index: {}]
  %s7 = inlined_call_operand.vmem [shape: f32[1,32], index: 7, kind: input, shape index: {}]
  %s8 = inlined_call_operand.vmem [shape: bf16[32,32], index: 8, kind: input, shape index: {}]
  %s9 = inlined_call_operand.vmem [shape: f32[1,32], index: 9, kind: input, shape index: {}]
  %s10 = inlined_call_operand.vmem [shape: f32[1,32], index: 10, kind: input, shape index: {}]
  %s11 = inlined_call_operand.<no memory space> [shape: f32[1,1], index: 11, kind: input, shape index: {}]
  %s12 = inlined_call_operand.vmem [shape: bf16[32,4], index: 12, kind: input, shape index: {}]
  %s13 = inlined_call_operand.vmem [shape: f32[1,4], index: 13, kind: input, shape index: {}]
  %s14 = inlined_call_operand.vmem [shape: f32[8,4], index: 14, kind: output, shape index: {0}]
  %s15 = inlined_call_operand.hbm [shape: f32[8,8], index: 15, kind: output, shape index: {1}]
  %16 = xla_tuple %s14, %s15
  %s17 = sld [smem:[#allocation0]]
  $region86: #{tpu_custom_call.1} parent=0
    _
  %s19 = ssub.s32 1, %s17
  %s20 = scalar_select 0, %s19, %s17
  %v21 = vstv %s11
  %22 = vst [vmem:[#allocation4] sm:$0x1] %v21
  $region1: #{tpu_custom_call.1} parent=0
    #allocation5 [shape = 'u8[4096]{0}', space=vmem, size = 0x1000, scoped, tag = 'input window, operand 1, single buffered']
    #allocation6 [shape = 's32[1]{0}', space=sflag, size = 0x4, scoped, tag = 'scoped memory for tpu_custom_call.1']
    #allocation7 [shape = 's32[1]{0}', space=sflag, size = 0x4, scoped, tag = 'scoped memory for tpu_custom_call.1']
    #allocation8 [shape = 'u8[512]{0}', space=vmem, size = 0x400, scoped, tag = 'input window, operand 2, single buffered']
    #allocation9 [shape = 's32[1]{0}', space=sflag, size = 0x4, scoped, tag = 'scoped memory for tpu_custom_call.1']
    #allocation10 [shape = 'u8[512]{0}', space=vmem, size = 0x400, scoped, tag = 'input window, operand 5, single buffered']
    #allocation11 [shape = 'u8[4096]{0}', space=vmem, size = 0x1000, scoped, tag = 'output window, operand 1, single buffered']
    %23 = vsyncpa [#allocation6], 0
    %24 = vsyncpa [#allocation9], 0
    %25 = vsyncpa [#allocation7], 0
    // Predicated region
    $region2: #{tpu_custom_call.1} parent=1 // pred_check
      _
    $region3: #{tpu_custom_call.1} parent=1 // pred_check_branch
      %27 = sbr.rel (0) target = $region5
    $region4: #{tpu_custom_call.1} parent=1 // pred_region
      _
    $region5: #{tpu_custom_call.1} parent=1 // pred_fallthru
      _
    // Predicated region
    $region6: #{tpu_custom_call.1} parent=1 // pred_check
      _
    $region7: #{tpu_custom_call.1} parent=1 // pred_check_branch
      %29 = sbr.rel (0) target = $region9
    $region8: #{tpu_custom_call.1} parent=1 // pred_region
      %s31 = ssub.s32 128, 128
      %32 = vsyncadd [#allocation6], %s31
      %s33 = sshll.u32 [#allocation5], 4
      %s34 = int_to_ptr.vmem [resolvable:$true] %s33
      %39 = dma.hbm_to_vmem [thread:$0]  %s1, 128, %s34, [#allocation6], 64, 64, 4
    $region9: #{tpu_custom_call.1} parent=1 // pred_fallthru
      _
    // Predicated region
    $region10: #{tpu_custom_call.1} parent=1 // pred_check
      _
    $region11: #{tpu_custom_call.1} parent=1 // pred_check_branch
      %41 = sbr.rel (0) target = $region13
    $region12: #{tpu_custom_call.1} parent=1 // pred_region
      %s43 = ssub.s32 16, 16
      %44 = vsyncadd [#allocation9], %s43
      %s46 = sshll.u32 [#allocation8], 4
      %s47 = int_to_ptr.vmem [resolvable:$true] %s46
      %49 = dma.hbm_to_vmem [thread:$0]  %s2, 16, %s47, [#allocation9]
    $region13: #{tpu_custom_call.1} parent=1 // pred_fallthru
      _
    // Predicated region
    $region14: #{tpu_custom_call.1} parent=1 // pred_check
      _
    $region15: #{tpu_custom_call.1} parent=1 // pred_check_branch
      %51 = sbr.rel (0) target = $region17
    $region16: #{tpu_custom_call.1} parent=1 // pred_region
      _
    $region17: #{tpu_custom_call.1} parent=1 // pred_fallthru
      _
    // Predicated region
    $region18: #{tpu_custom_call.1} parent=1 // pred_check
      _
    $region19: #{tpu_custom_call.1} parent=1 // pred_check_branch
      %53 = sbr.rel (0) target = $region21
    $region20: #{tpu_custom_call.1} parent=1 // pred_region
      _
    $region21: #{tpu_custom_call.1} parent=1 // pred_fallthru
      _
    // Predicated region
    $region22: #{tpu_custom_call.1} parent=1 // pred_check
      _
    $region23: #{tpu_custom_call.1} parent=1 // pred_check_branch
      %55 = sbr.rel (0) target = $region25
    $region24: #{tpu_custom_call.1} parent=1 // pred_region
      %s57 = ssub.s32 16, 16
      %58 = vsyncadd [#allocation9], %s57
      %s60 = sshll.u32 [#allocation10], 4
      %s61 = int_to_ptr.vmem [resolvable:$true] %s60
      %63 = dma.hbm_to_vmem [thread:$0]  %s5, 16, %s61, [#allocation9]
    $region25: #{tpu_custom_call.1} parent=1 // pred_fallthru
      _
    // Predicated region
    $region26: #{tpu_custom_call.1} parent=1 // pred_check
      _
    $region27: #{tpu_custom_call.1} parent=1 // pred_check_branch
      %65 = sbr.rel (0) target = $region29
    $region28: #{tpu_custom_call.1} parent=1 // pred_region
      _
    $region29: #{tpu_custom_call.1} parent=1 // pred_fallthru
      _
    // Predicated region
    $region30: #{tpu_custom_call.1} parent=1 // pred_check
      _
    $region31: #{tpu_custom_call.1} parent=1 // pred_check_branch
      %67 = sbr.rel (0) target = $region33
    $region32: #{tpu_custom_call.1} parent=1 // pred_region
      _
    $region33: #{tpu_custom_call.1} parent=1 // pred_fallthru
      _
    // Predicated region
    $region34: #{tpu_custom_call.1} parent=1 // pred_check
      _
    $region35: #{tpu_custom_call.1} parent=1 // pred_check_branch
      %69 = sbr.rel (0) target = $region37
    $region36: #{tpu_custom_call.1} parent=1 // pred_region
      _
    $region37: #{tpu_custom_call.1} parent=1 // pred_fallthru
      _
    // Predicated region
    $region38: #{tpu_custom_call.1} parent=1 // pred_check
      _
    $region39: #{tpu_custom_call.1} parent=1 // pred_check_branch
      %71 = sbr.rel (0) target = $region41
    $region40: #{tpu_custom_call.1} parent=1 // pred_region
      _
    $region41: #{tpu_custom_call.1} parent=1 // pred_fallthru
      _
    // Predicated region
    $region42: #{tpu_custom_call.1} parent=1 // pred_check
      _
    $region43: #{tpu_custom_call.1} parent=1 // pred_check_branch
      %73 = sbr.rel (0) target = $region45
    $region44: #{tpu_custom_call.1} parent=1 // pred_region
      _
    $region45: #{tpu_custom_call.1} parent=1 // pred_fallthru
      _
    // Predicated region
    $region46: #{tpu_custom_call.1} parent=1 // pred_check
      _
    $region47: #{tpu_custom_call.1} parent=1 // pred_check_branch
      %75 = sbr.rel (0) target = $region49
    $region48: #{tpu_custom_call.1} parent=1 // pred_region
      _
    $region49: #{tpu_custom_call.1} parent=1 // pred_fallthru
      _
    // Predicated region
    $region50: #{tpu_custom_call.1} parent=1 // pred_check
      _
    $region51: #{tpu_custom_call.1} parent=1 // pred_check_branch
      %77 = sbr.rel (0) target = $region53
    $region52: #{tpu_custom_call.1} parent=1 // pred_region
      _
    $region53: #{tpu_custom_call.1} parent=1 // pred_fallthru
      _
    // Predicated region
    $region54: #{tpu_custom_call.1} parent=1 // pred_check
      _
    $region55: #{tpu_custom_call.1} parent=1 // pred_check_branch
      %79 = sbr.rel (0) target = $region57
    $region56: #{tpu_custom_call.1} parent=1 // pred_region
      _
    $region57: #{tpu_custom_call.1} parent=1 // pred_fallthru
      _
    // Predicated region
    $region58: #{tpu_custom_call.1} parent=1 // pred_check
      _
    $region59: #{tpu_custom_call.1} parent=1 // pred_check_branch
      %81 = sbr.rel (0) target = $region61
    $region60: #{tpu_custom_call.1} parent=1 // pred_region
      %82 = dma.done [#allocation6], 128
    $region61: #{tpu_custom_call.1} parent=1 // pred_fallthru
      _
    // Predicated region
    $region62: #{tpu_custom_call.1} parent=1 // pred_check
      _
    $region63: #{tpu_custom_call.1} parent=1 // pred_check_branch
      %84 = sbr.rel (0) target = $region65
    $region64: #{tpu_custom_call.1} parent=1 // pred_region
      %85 = dma.done [#allocation9], 16
    $region65: #{tpu_custom_call.1} parent=1 // pred_fallthru
      _
    // Predicated region
    $region66: #{tpu_custom_call.1} parent=1 // pred_check
      _
    $region67: #{tpu_custom_call.1} parent=1 // pred_check_branch
      %87 = sbr.rel (0) target = $region69
    $region68: #{tpu_custom_call.1} parent=1 // pred_region
      %88 = dma.done [#allocation9], 16
    $region69: #{tpu_custom_call.1} parent=1 // pred_fallthru
      _
    %v90 = vld [vmem:[%s0] sm:$0xf]
    %v91 = vld [vmem:[%s0 + $0x4] sm:$0xf]
    %v92 = vld [vmem:[%s0 + $0x8] sm:$0xf]
    %v93 = vld [vmem:[%s0 + $0xc] sm:$0xf]
    %v94 = vld [vmem:[%s0 + $0x10] sm:$0xf]
    %v95 = vld [vmem:[%s0 + $0x14] sm:$0xf]
    %v96 = vld [vmem:[%s0 + $0x18] sm:$0xf]
    %v97 = vld [vmem:[%s0 + $0x1c] sm:$0xf]
    %v98 = vld [vmem:[#allocation5] sm:$0xf]
    %v99 = vld [vmem:[#allocation5 + $0x4] sm:$0xf]
    %v100 = vld [vmem:[#allocation8] sm:$0x1]
    %v102 = vlaneseq
    %v103 = vshrl.u32 %v102, 7
    %v104 = vsub.s32 0, %v103
    %v105 = vrot.slane %v100, %v104
    %v115 = vunpack.c.l.b16 %v90
    %v116 = vunpack.c.l.b16 %v91
    %v117 = vunpack.c.l.b16 %v92
    %v118 = vunpack.c.l.b16 %v93
    %v119 = vunpack.c.l.b16 %v94
    %v120 = vunpack.c.l.b16 %v95
    %v121 = vunpack.c.l.b16 %v96
    %v122 = vunpack.c.l.b16 %v97
    %v123 = vpack.c.b16 %v116, %v115
    %v124 = vpack.c.b16 %v118, %v117
    %v125 = vpack.c.b16 %v120, %v119
    %v126 = vpack.c.b16 %v122, %v121
    %v129 = vunpack.c.l.b16 %v98
    %v130 = vunpack.c.l.b16 %v99
    %v131 = vpack.c.b16 %v130, %v129
    %vm133 = vcmask 130048
    %v135 = vsel %vm133, %v123, 0
    %v138 = vsel %vm133, %v124, 0
    %v141 = vsel %vm133, %v125, 0
    %v144 = vsel %vm133, %v126, 0
    %146 = vmatprep.subr.bf16.mxu0 0
    %147 = vmatpush1.bf16.msra.mxu0 %v131
    %148 = vmatprep.subr.bf16.mxu0 0
    %149 = vmatpush1.bf16.msra.mxu0 0
    %150 = vmatprep.subr.bf16.mxu0 0
    %151 = vmatpush1.bf16.msra.mxu0 0
    %152 = vmatprep.subr.bf16.mxu0 0
    %153 = vmatpush1.bf16.msra.mxu0 0
    %154 = vmatprep.subr.bf16.mxu0 0
    %155 = vmatpush1.bf16.msra.mxu0 0
    %156 = vmatprep.subr.bf16.mxu0 0
    %157 = vmatpush1.bf16.msra.mxu0 0
    %158 = vmatprep.subr.bf16.mxu0 0
    %159 = vmatpush1.bf16.msra.mxu0 0
    %160 = vmatprep.subr.bf16.mxu0 0
    %161 = vmatpush1.bf16.msra.mxu0 0
    %162 = vmatprep.subr.bf16.mxu0 0
    %163 = vmatpush1.bf16.msra.mxu0 0
    %164 = vmatprep.subr.bf16.mxu0 0
    %165 = vmatpush1.bf16.msra.mxu0 0
    %166 = vmatprep.subr.bf16.mxu0 0
    %167 = vmatpush1.bf16.msra.mxu0 0
    %168 = vmatprep.subr.bf16.mxu0 0
    %169 = vmatpush1.bf16.msra.mxu0 0
    %170 = vmatprep.subr.bf16.mxu0 0
    %171 = vmatpush1.bf16.msra.mxu0 0
    %172 = vmatprep.subr.bf16.mxu0 0
    %173 = vmatpush1.bf16.msra.mxu0 0
    %174 = vmatprep.subr.bf16.mxu0 0
    %175 = vmatpush1.bf16.msra.mxu0 0
    %176 = vmatprep.subr.bf16.mxu0 0
    %177 = vmatpush1.bf16.msra.mxu0 0
    %178 = vmatprep.mubr.bf16.mxu0 0
    %179 = vmatmul.mubr.bf16.gmra.mrb[0].mxu0 %v135
    %v180 = vpop.f32.mrb[0].mxu0
    %v181 = vadd.f32 %v105, %v180
    %v182 = vpop.f32.mrb[0].mxu0
    %v183 = vpop.f32.mrb[0].mxu0
    %v184 = vadd.f32 %v105, %v183
    %v185 = vpop.f32.mrb[0].mxu0
    %186 = vmatprep.mubr.bf16.mxu0 0
    %187 = vmatmul.mubr.bf16.gmra.mrb[0].mxu0 %v138
    %v188 = vpop.f32.mrb[0].mxu0
    %v189 = vadd.f32 %v105, %v188
    %v190 = vpop.f32.mrb[0].mxu0
    %v191 = vpop.f32.mrb[0].mxu0
    %v192 = vadd.f32 %v105, %v191
    %v193 = vpop.f32.mrb[0].mxu0
    %194 = vmatprep.mubr.bf16.mxu0 0
    %195 = vmatmul.mubr.bf16.gmra.mrb[0].mxu0 %v141
    %v196 = vpop.f32.mrb[0].mxu0
    %v197 = vadd.f32 %v105, %v196
    %v198 = vpop.f32.mrb[0].mxu0
    %v199 = vpop.f32.mrb[0].mxu0
    %v200 = vadd.f32 %v105, %v199
    %v201 = vpop.f32.mrb[0].mxu0
    %202 = vmatprep.mubr.bf16.mxu0 0
    %203 = vmatmul.mubr.bf16.gmra.mrb[0].mxu0 %v144
    %v204 = vpop.f32.mrb[0].mxu0
    %v205 = vadd.f32 %v105, %v204
    %v206 = vpop.f32.mrb[0].mxu0
    %v207 = vpop.f32.mrb[0].mxu0
    %v208 = vadd.f32 %v105, %v207
    %v209 = vpop.f32.mrb[0].mxu0
    %210 = vdwg.mxu0
    %211 = vst [vmem:[#allocation2] sm:$0xff] %v181
    %212 = vst [vmem:[#allocation2 + $0x8] sm:$0xff] %v184
    %213 = vst [vmem:[#allocation2 + $0x10] sm:$0xff] %v189
    %214 = vst [vmem:[#allocation2 + $0x18] sm:$0xff] %v192
    %215 = vst [vmem:[#allocation2 + $0x20] sm:$0xff] %v197
    %216 = vst [vmem:[#allocation2 + $0x28] sm:$0xff] %v200
    %217 = vst [vmem:[#allocation2 + $0x30] sm:$0xff] %v205
    %218 = vst [vmem:[#allocation2 + $0x38] sm:$0xff] %v208
    %v219 = vld [vmem:[#allocation10] sm:$0x1]
    %v220 = vld [vmem:[%s3] sm:$0xff]
    %v221 = vld [vmem:[%s3 + $0x8] sm:$0xff]
    %v222 = vld [vmem:[%s3 + $0x10] sm:$0xff]
    %v223 = vld [vmem:[%s3 + $0x18] sm:$0xff]
    %v224 = vld [vmem:[%s4] sm:$0xf]
    %v225 = vld [vmem:[%s4 + $0x4] sm:$0xf]
    %v226 = vld [vmem:[%s4 + $0x8] sm:$0xf]
    %v227 = vld [vmem:[%s4 + $0xc] sm:$0xf]
    %v228 = vld [vmem:[#allocation2] sm:$0xff]
    %v229 = vxor.u32 %v228, 2147483648
    %v230 = vmul.f32 %v229, 1.442695
    %v231 = vpow.pop %v230
    %v232 = vadd.f32 %v231, 1.0
    %v233 = vrcp.pop %v232
    %v234 = vmul.f32 1.0, %v233
    %v235 = vmul.f32 %v234, 2.0
    %v236 = vsub.f32 %v235, 1.0
    %v237 = vmul.f32 %v234, 0.0
    %239 = vrot.lane.b32.xlu0 %v236, 64
    %v240 = vpop.permute.xlu0 %239
    %v242 = vmul.f32 %v234, %v240
    %244 = vrot.lane.b32.xlu0 %v242, 32
    %v245 = vpop.permute.xlu0 %244
    %v247 = vadd.f32 %v237, %v245
    %v248 = vtanh.pop %v247
    %250 = vrot.lane.b32.xlu0 %v248, 64
    %v251 = vpop.permute.xlu0 %250
    %v253 = vmul.f32 %v234, %v251
    %v254 = vpack.c.bf16 %v253, %v253
    %256 = vrot.lane.b32.xlu0 %v254, 32
    %v257 = vpop.permute.xlu0 %256
    %v262 = vunpack.c.l.b16 %v220
    %v263 = vunpack.c.h.b16 %v220
    %v264 = vunpack.c.l.b16 %v221
    %v265 = vunpack.c.h.b16 %v221
    %v266 = vunpack.c.l.b16 %v222
    %v267 = vunpack.c.h.b16 %v222
    %v268 = vunpack.c.l.b16 %v223
    %v269 = vunpack.c.h.b16 %v223
    %v270 = vpack.c.b16 %v264, %v262
    %v271 = vpack.c.b16 %v265, %v263
    %v272 = vpack.c.b16 %v268, %v266
    %v273 = vpack.c.b16 %v269, %v267
    %vm278 = vcmask 261120
    %v280 = vsel %vm278, %v257, 0
    %282 = vmatprep.subr.bf16.mxu0 %v271
    %283 = vmatpush1.bf16.msra.mxu0 %v270
    %284 = vmatprep.subr.bf16.mxu0 %v273
    %285 = vmatpush1.bf16.msra.mxu0 %v272
    %286 = vmatprep.subr.bf16.mxu0 0
    %287 = vmatpush1.bf16.msra.mxu0 0
    %288 = vmatprep.subr.bf16.mxu0 0
    %289 = vmatpush1.bf16.msra.mxu0 0
    %290 = vmatprep.subr.bf16.mxu0 0
    %291 = vmatpush1.bf16.msra.mxu0 0
    %292 = vmatprep.subr.bf16.mxu0 0
    %293 = vmatpush1.bf16.msra.mxu0 0
    %294 = vmatprep.subr.bf16.mxu0 0
    %295 = vmatpush1.bf16.msra.mxu0 0
    %296 = vmatprep.subr.bf16.mxu0 0
    %297 = vmatpush1.bf16.msra.mxu0 0
    %298 = vmatprep.subr.bf16.mxu0 0
    %299 = vmatpush1.bf16.msra.mxu0 0
    %300 = vmatprep.subr.bf16.mxu0 0
    %301 = vmatpush1.bf16.msra.mxu0 0
    %302 = vmatprep.subr.bf16.mxu0 0
    %303 = vmatpush1.bf16.msra.mxu0 0
    %304 = vmatprep.subr.bf16.mxu0 0
    %305 = vmatpush1.bf16.msra.mxu0 0
    %306 = vmatprep.subr.bf16.mxu0 0
    %307 = vmatpush1.bf16.msra.mxu0 0
    %308 = vmatprep.subr.bf16.mxu0 0
    %309 = vmatpush1.bf16.msra.mxu0 0
    %310 = vmatprep.subr.bf16.mxu0 0
    %311 = vmatpush1.bf16.msra.mxu0 0
    %312 = vmatprep.subr.bf16.mxu0 0
    %313 = vmatpush1.bf16.msra.mxu0 0
    %314 = vmatprep.mubr.bf16.mxu0 0
    %315 = vmatmul.mubr.bf16.gmra.mrb[0].mxu0 %v280
    %v316 = vpop.f32.mrb[0].mxu0
    %v317 = vadd.f32 0.0, %v316
    %v318 = vpop.f32.mrb[0].mxu0
    %v319 = vadd.f32 0.0, %v318
    %v320 = vpop.f32.mrb[0].mxu0
    %v321 = vpop.f32.mrb[0].mxu0
    %322 = vdwg.mxu0
    %v327 = vunpack.c.l.b16 %v224
    %v328 = vunpack.c.l.b16 %v225
    %v329 = vunpack.c.l.b16 %v226
    %v330 = vunpack.c.l.b16 %v227
    %v331 = vpack.c.b16 %v328, %v327
    %v332 = vpack.c.b16 %v330, %v329
    %v336 = vsel %vm278, 0, 0
    %338 = vmatprep.subr.bf16.mxu0 0
    %339 = vmatpush1.bf16.msra.mxu0 %v331
    %340 = vmatprep.subr.bf16.mxu0 0
    %341 = vmatpush1.bf16.msra.mxu0 %v332
    %342 = vmatprep.subr.bf16.mxu0 0
    %343 = vmatpush1.bf16.msra.mxu0 0
    %344 = vmatprep.subr.bf16.mxu0 0
    %345 = vmatpush1.bf16.msra.mxu0 0
    %346 = vmatprep.subr.bf16.mxu0 0
    %347 = vmatpush1.bf16.msra.mxu0 0
    %348 = vmatprep.subr.bf16.mxu0 0
    %349 = vmatpush1.bf16.msra.mxu0 0
    %350 = vmatprep.subr.bf16.mxu0 0
    %351 = vmatpush1.bf16.msra.mxu0 0
    %352 = vmatprep.subr.bf16.mxu0 0
    %353 = vmatpush1.bf16.msra.mxu0 0
    %354 = vmatprep.subr.bf16.mxu0 0
    %355 = vmatpush1.bf16.msra.mxu0 0
    %356 = vmatprep.subr.bf16.mxu0 0
    %357 = vmatpush1.bf16.msra.mxu0 0
    %358 = vmatprep.subr.bf16.mxu0 0
    %359 = vmatpush1.bf16.msra.mxu0 0
    %360 = vmatprep.subr.bf16.mxu0 0
    %361 = vmatpush1.bf16.msra.mxu0 0
    %362 = vmatprep.subr.bf16.mxu0 0
    %363 = vmatpush1.bf16.msra.mxu0 0
    %364 = vmatprep.subr.bf16.mxu0 0
    %365 = vmatpush1.bf16.msra.mxu0 0
    %366 = vmatprep.subr.bf16.mxu0 0
    %367 = vmatpush1.bf16.msra.mxu0 0
    %368 = vmatprep.subr.bf16.mxu0 0
    %369 = vmatpush1.bf16.msra.mxu0 0
    %370 = vmatprep.mubr.bf16.mxu0 0
    %371 = vmatmul.mubr.bf16.gmra.mrb[0].mxu0 %v336
    %v372 = vpop.f32.mrb[0].mxu0
    %v373 = vadd.f32 0.0, %v372
    %v374 = vpop.f32.mrb[0].mxu0
    %v375 = vpop.f32.mrb[0].mxu0
    %v376 = vpop.f32.mrb[0].mxu0
    %377 = vdwg.mxu0
    %v378 = vld [vmem:[#allocation2 + $0x8] sm:$0xff]
    %v379 = vadd.f32 %v378, %v317
    %v380 = vadd.f32 %v319, %v373
    %v382 = vlaneseq
    %v383 = vshrl.u32 %v382, 7
    %v384 = vsub.s32 0, %v383
    %v385 = vrot.slane %v219, %v384
    %v387 = vadd.f32 %v380, %v385
    %v388 = vxor.u32 %v387, 2147483648
    %v389 = vmul.f32 %v388, 1.442695
    %v390 = vpow.pop %v389
    %v391 = vadd.f32 %v390, 1.0
    %v392 = vrcp.pop %v391
    %v393 = vmul.f32 1.0, %v392
    %v394 = vmul.f32 %v393, 2.0
    %v395 = vsub.f32 %v394, 1.0
    %v396 = vmul.f32 %v393, 0.0
    %398 = vrot.lane.b32.xlu0 %v395, 64
    %v399 = vpop.permute.xlu0 %398
    %v401 = vmul.f32 %v393, %v399
    %403 = vrot.lane.b32.xlu0 %v401, 32
    %v404 = vpop.permute.xlu0 %403
    %v406 = vadd.f32 %v396, %v404
    %v407 = vtanh.pop %v406
    %409 = vrot.lane.b32.xlu0 %v407, 64
    %v410 = vpop.permute.xlu0 %409
    %v412 = vmul.f32 %v393, %v410
    %414 = vrot.lane.b32.xlu0 %v412, 32
    %v415 = vpop.permute.xlu0 %414
    %417 = vst.msk [vmem:[#allocation3] sm:$0xff] %vm278, %v415
    %v418 = vxor.u32 %v379, 2147483648
    %v419 = vmul.f32 %v418, 1.442695
    %v420 = vpow.pop %v419
    %v421 = vadd.f32 %v420, 1.0
    %v422 = vrcp.pop %v421
    %v423 = vmul.f32 1.0, %v422
    %v424 = vmul.f32 %v423, 2.0
    %v425 = vsub.f32 %v424, 1.0
    %v426 = vmul.f32 %v423, %v247
    %428 = vrot.lane.b32.xlu0 %v425, 64
    %v429 = vpop.permute.xlu0 %428
    %v431 = vmul.f32 %v423, %v429
    %433 = vrot.lane.b32.xlu0 %v431, 32
    %v434 = vpop.permute.xlu0 %433
    %v436 = vadd.f32 %v426, %v434
    %v437 = vtanh.pop %v436
    %439 = vrot.lane.b32.xlu0 %v437, 64
    %v440 = vpop.permute.xlu0 %439
    %v442 = vmul.f32 %v423, %v440
    %v443 = vpack.c.bf16 %v442, %v442
    %445 = vrot.lane.b32.xlu0 %v443, 32
    %v446 = vpop.permute.xlu0 %445
    %v448 = vsel %vm278, %v446, 0
    %450 = vmatprep.subr.bf16.mxu0 %v271
    %451 = vmatpush1.bf16.msra.mxu0 %v270
    %452 = vmatprep.subr.bf16.mxu0 %v273
    %453 = vmatpush1.bf16.msra.mxu0 %v272
    %454 = vmatprep.subr.bf16.mxu0 0
    %455 = vmatpush1.bf16.msra.mxu0 0
    %456 = vmatprep.subr.bf16.mxu0 0
    %457 = vmatpush1.bf16.msra.mxu0 0
    %458 = vmatprep.subr.bf16.mxu0 0
    %459 = vmatpush1.bf16.msra.mxu0 0
    %460 = vmatprep.subr.bf16.mxu0 0
    %461 = vmatpush1.bf16.msra.mxu0 0
    %462 = vmatprep.subr.bf16.mxu0 0
    %463 = vmatpush1.bf16.msra.mxu0 0
    %464 = vmatprep.subr.bf16.mxu0 0
    %465 = vmatpush1.bf16.msra.mxu0 0
    %466 = vmatprep.subr.bf16.mxu0 0
    %467 = vmatpush1.bf16.msra.mxu0 0
    %468 = vmatprep.subr.bf16.mxu0 0
    %469 = vmatpush1.bf16.msra.mxu0 0
    %470 = vmatprep.subr.bf16.mxu0 0
    %471 = vmatpush1.bf16.msra.mxu0 0
    %472 = vmatprep.subr.bf16.mxu0 0
    %473 = vmatpush1.bf16.msra.mxu0 0
    %474 = vmatprep.subr.bf16.mxu0 0
    %475 = vmatpush1.bf16.msra.mxu0 0
    %476 = vmatprep.subr.bf16.mxu0 0
    %477 = vmatpush1.bf16.msra.mxu0 0
    %478 = vmatprep.subr.bf16.mxu0 0
    %479 = vmatpush1.bf16.msra.mxu0 0
    %480 = vmatprep.subr.bf16.mxu0 0
    %481 = vmatpush1.bf16.msra.mxu0 0
    %482 = vmatprep.mubr.bf16.mxu0 0
    %483 = vmatmul.mubr.bf16.gmra.mrb[0].mxu0 %v448
    %v484 = vpop.f32.mrb[0].mxu0
    %v485 = vadd.f32 0.0, %v484
    %v486 = vpop.f32.mrb[0].mxu0
    %v487 = vadd.f32 0.0, %v486
    %v488 = vpop.f32.mrb[0].mxu0
    %v489 = vpop.f32.mrb[0].mxu0
    %490 = vdwg.mxu0
    %v491 = vpack.c.bf16 %v412, %v412
    %493 = vrot.lane.b32.xlu0 %v491, 32
    %v494 = vpop.permute.xlu0 %493
    %v496 = vsel %vm278, %v494, 0
    %498 = vmatprep.subr.bf16.mxu0 0
    %499 = vmatpush1.bf16.msra.mxu0 %v331
    %500 = vmatprep.subr.bf16.mxu0 0
    %501 = vmatpush1.bf16.msra.mxu0 %v332
    %502 = vmatprep.subr.bf16.mxu0 0
    %503 = vmatpush1.bf16.msra.mxu0 0
    %504 = vmatprep.subr.bf16.mxu0 0
    %505 = vmatpush1.bf16.msra.mxu0 0
    %506 = vmatprep.subr.bf16.mxu0 0
    %507 = vmatpush1.bf16.msra.mxu0 0
    %508 = vmatprep.subr.bf16.mxu0 0
    %509 = vmatpush1.bf16.msra.mxu0 0
    %510 = vmatprep.subr.bf16.mxu0 0
    %511 = vmatpush1.bf16.msra.mxu0 0
    %512 = vmatprep.subr.bf16.mxu0 0
    %513 = vmatpush1.bf16.msra.mxu0 0
    %514 = vmatprep.subr.bf16.mxu0 0
    %515 = vmatpush1.bf16.msra.mxu0 0
    %516 = vmatprep.subr.bf16.mxu0 0
    %517 = vmatpush1.bf16.msra.mxu0 0
    %518 = vmatprep.subr.bf16.mxu0 0
    %519 = vmatpush1.bf16.msra.mxu0 0
    %520 = vmatprep.subr.bf16.mxu0 0
    %521 = vmatpush1.bf16.msra.mxu0 0
    %522 = vmatprep.subr.bf16.mxu0 0
    %523 = vmatpush1.bf16.msra.mxu0 0
    %524 = vmatprep.subr.bf16.mxu0 0
    %525 = vmatpush1.bf16.msra.mxu0 0
    %526 = vmatprep.subr.bf16.mxu0 0
    %527 = vmatpush1.bf16.msra.mxu0 0
    %528 = vmatprep.subr.bf16.mxu0 0
    %529 = vmatpush1.bf16.msra.mxu0 0
    %530 = vmatprep.mubr.bf16.mxu0 0
    %531 = vmatmul.mubr.bf16.gmra.mrb[0].mxu0 %v496
    %v532 = vpop.f32.mrb[0].mxu0
    %v533 = vadd.f32 0.0, %v532
    %v534 = vpop.f32.mrb[0].mxu0
    %v535 = vpop.f32.mrb[0].mxu0
    %v536 = vpop.f32.mrb[0].mxu0
    %537 = vdwg.mxu0
    %v538 = vld [vmem:[#allocation2 + $0x10] sm:$0xff]
    %v539 = vadd.f32 %v538, %v485
    %v540 = vadd.f32 %v487, %v533
    %v541 = vadd.f32 %v540, %v385
    %v542 = vxor.u32 %v541, 2147483648
    %v543 = vmul.f32 %v542, 1.442695
    %v544 = vpow.pop %v543
    %v545 = vadd.f32 %v544, 1.0
    %v546 = vrcp.pop %v545
    %v547 = vmul.f32 1.0, %v546
    %v548 = vmul.f32 %v547, 2.0
    %v549 = vsub.f32 %v548, 1.0
    %v550 = vmul.f32 %v547, %v406
    %552 = vrot.lane.b32.xlu0 %v549, 64
    %v553 = vpop.permute.xlu0 %552
    %v555 = vmul.f32 %v547, %v553
    %557 = vrot.lane.b32.xlu0 %v555, 32
    %v558 = vpop.permute.xlu0 %557
    %v560 = vadd.f32 %v550, %v558
    %v561 = vtanh.pop %v560
    %563 = vrot.lane.b32.xlu0 %v561, 64
    %v564 = vpop.permute.xlu0 %563
    %v566 = vmul.f32 %v547, %v564
    %568 = vrot.lane.b32.xlu0 %v566, 32
    %v569 = vpop.permute.xlu0 %568
    %571 = vst.msk [vmem:[#allocation3 + $0x8] sm:$0xff] %vm278, %v569
    %v572 = vxor.u32 %v539, 2147483648
    %v573 = vmul.f32 %v572, 1.442695
    %v574 = vpow.pop %v573
    %v575 = vadd.f32 %v574, 1.0
    %v576 = vrcp.pop %v575
    %v577 = vmul.f32 1.0, %v576
    %v578 = vmul.f32 %v577, 2.0
    %v579 = vsub.f32 %v578, 1.0
    %v580 = vmul.f32 %v577, %v436
    %582 = vrot.lane.b32.xlu0 %v579, 64
    %v583 = vpop.permute.xlu0 %582
    %v585 = vmul.f32 %v577, %v583
    %587 = vrot.lane.b32.xlu0 %v585, 32
    %v588 = vpop.permute.xlu0 %587
    %v590 = vadd.f32 %v580, %v588
    %v591 = vtanh.pop %v590
    %593 = vrot.lane.b32.xlu0 %v591, 64
    %v594 = vpop.permute.xlu0 %593
    %v596 = vmul.f32 %v577, %v594
    %v597 = vpack.c.bf16 %v596, %v596
    %599 = vrot.lane.b32.xlu0 %v597, 32
    %v600 = vpop.permute.xlu0 %599
    %v602 = vsel %vm278, %v600, 0
    %604 = vmatprep.subr.bf16.mxu0 %v271
    %605 = vmatpush1.bf16.msra.mxu0 %v270
    %606 = vmatprep.subr.bf16.mxu0 %v273
    %607 = vmatpush1.bf16.msra.mxu0 %v272
    %608 = vmatprep.subr.bf16.mxu0 0
    %609 = vmatpush1.bf16.msra.mxu0 0
    %610 = vmatprep.subr.bf16.mxu0 0
    %611 = vmatpush1.bf16.msra.mxu0 0
    %612 = vmatprep.subr.bf16.mxu0 0
    %613 = vmatpush1.bf16.msra.mxu0 0
    %614 = vmatprep.subr.bf16.mxu0 0
    %615 = vmatpush1.bf16.msra.mxu0 0
    %616 = vmatprep.subr.bf16.mxu0 0
    %617 = vmatpush1.bf16.msra.mxu0 0
    %618 = vmatprep.subr.bf16.mxu0 0
    %619 = vmatpush1.bf16.msra.mxu0 0
    %620 = vmatprep.subr.bf16.mxu0 0
    %621 = vmatpush1.bf16.msra.mxu0 0
    %622 = vmatprep.subr.bf16.mxu0 0
    %623 = vmatpush1.bf16.msra.mxu0 0
    %624 = vmatprep.subr.bf16.mxu0 0
    %625 = vmatpush1.bf16.msra.mxu0 0
    %626 = vmatprep.subr.bf16.mxu0 0
    %627 = vmatpush1.bf16.msra.mxu0 0
    %628 = vmatprep.subr.bf16.mxu0 0
    %629 = vmatpush1.bf16.msra.mxu0 0
    %630 = vmatprep.subr.bf16.mxu0 0
    %631 = vmatpush1.bf16.msra.mxu0 0
    %632 = vmatprep.subr.bf16.mxu0 0
    %633 = vmatpush1.bf16.msra.mxu0 0
    %634 = vmatprep.subr.bf16.mxu0 0
    %635 = vmatpush1.bf16.msra.mxu0 0
    %636 = vmatprep.mubr.bf16.mxu0 0
    %637 = vmatmul.mubr.bf16.gmra.mrb[0].mxu0 %v602
    %v638 = vpop.f32.mrb[0].mxu0
    %v639 = vadd.f32 0.0, %v638
    %v640 = vpop.f32.mrb[0].mxu0
    %v641 = vadd.f32 0.0, %v640
    %v642 = vpop.f32.mrb[0].mxu0
    %v643 = vpop.f32.mrb[0].mxu0
    %644 = vdwg.mxu0
    %v645 = vpack.c.bf16 %v566, %v566
    %647 = vrot.lane.b32.xlu0 %v645, 32
    %v648 = vpop.permute.xlu0 %647
    %v650 = vsel %vm278, %v648, 0
    %652 = vmatprep.subr.bf16.mxu0 0
    %653 = vmatpush1.bf16.msra.mxu0 %v331
    %654 = vmatprep.subr.bf16.mxu0 0
    %655 = vmatpush1.bf16.msra.mxu0 %v332
    %656 = vmatprep.subr.bf16.mxu0 0
    %657 = vmatpush1.bf16.msra.mxu0 0
    %658 = vmatprep.subr.bf16.mxu0 0
    %659 = vmatpush1.bf16.msra.mxu0 0
    %660 = vmatprep.subr.bf16.mxu0 0
    %661 = vmatpush1.bf16.msra.mxu0 0
    %662 = vmatprep.subr.bf16.mxu0 0
    %663 = vmatpush1.bf16.msra.mxu0 0
    %664 = vmatprep.subr.bf16.mxu0 0
    %665 = vmatpush1.bf16.msra.mxu0 0
    %666 = vmatprep.subr.bf16.mxu0 0
    %667 = vmatpush1.bf16.msra.mxu0 0
    %668 = vmatprep.subr.bf16.mxu0 0
    %669 = vmatpush1.bf16.msra.mxu0 0
    %670 = vmatprep.subr.bf16.mxu0 0
    %671 = vmatpush1.bf16.msra.mxu0 0
    %672 = vmatprep.subr.bf16.mxu0 0
    %673 = vmatpush1.bf16.msra.mxu0 0
    %674 = vmatprep.subr.bf16.mxu0 0
    %675 = vmatpush1.bf16.msra.mxu0 0
    %676 = vmatprep.subr.bf16.mxu0 0
    %677 = vmatpush1.bf16.msra.mxu0 0
    %678 = vmatprep.subr.bf16.mxu0 0
    %679 = vmatpush1.bf16.msra.mxu0 0
    %680 = vmatprep.subr.bf16.mxu0 0
    %681 = vmatpush1.bf16.msra.mxu0 0
    %682 = vmatprep.subr.bf16.mxu0 0
    %683 = vmatpush1.bf16.msra.mxu0 0
    %684 = vmatprep.mubr.bf16.mxu0 0
    %685 = vmatmul.mubr.bf16.gmra.mrb[0].mxu0 %v650
    %v686 = vpop.f32.mrb[0].mxu0
    %v687 = vadd.f32 0.0, %v686
    %v688 = vpop.f32.mrb[0].mxu0
    %v689 = vpop.f32.mrb[0].mxu0
    %v690 = vpop.f32.mrb[0].mxu0
    %691 = vdwg.mxu0
    %v692 = vld [vmem:[#allocation2 + $0x18] sm:$0xff]
    %v693 = vadd.f32 %v692, %v639
    %v694 = vadd.f32 %v641, %v687
    %v695 = vadd.f32 %v694, %v385
    %v696 = vxor.u32 %v695, 2147483648
    %v697 = vmul.f32 %v696, 1.442695
    %v698 = vpow.pop %v697
    %v699 = vadd.f32 %v698, 1.0
    %v700 = vrcp.pop %v699
    %v701 = vmul.f32 1.0, %v700
    %v702 = vmul.f32 %v701, 2.0
    %v703 = vsub.f32 %v702, 1.0
    %v704 = vmul.f32 %v701, %v560
    %706 = vrot.lane.b32.xlu0 %v703, 64
    %v707 = vpop.permute.xlu0 %706
    %v709 = vmul.f32 %v701, %v707
    %711 = vrot.lane.b32.xlu0 %v709, 32
    %v712 = vpop.permute.xlu0 %711
    %v714 = vadd.f32 %v704, %v712
    %v715 = vtanh.pop %v714
    %717 = vrot.lane.b32.xlu0 %v715, 64
    %v718 = vpop.permute.xlu0 %717
    %v720 = vmul.f32 %v701, %v718
    %722 = vrot.lane.b32.xlu0 %v720, 32
    %v723 = vpop.permute.xlu0 %722
    %725 = vst.msk [vmem:[#allocation3 + $0x10] sm:$0xff] %vm278, %v723
    %v726 = vxor.u32 %v693, 2147483648
    %v727 = vmul.f32 %v726, 1.442695
    %v728 = vpow.pop %v727
    %v729 = vadd.f32 %v728, 1.0
    %v730 = vrcp.pop %v729
    %v731 = vmul.f32 1.0, %v730
    %v732 = vmul.f32 %v731, 2.0
    %v733 = vsub.f32 %v732, 1.0
    %v734 = vmul.f32 %v731, %v590
    %736 = vrot.lane.b32.xlu0 %v733, 64
    %v737 = vpop.permute.xlu0 %736
    %v739 = vmul.f32 %v731, %v737
    %741 = vrot.lane.b32.xlu0 %v739, 32
    %v742 = vpop.permute.xlu0 %741
    %v744 = vadd.f32 %v734, %v742
    %v745 = vtanh.pop %v744
    %747 = vrot.lane.b32.xlu0 %v745, 64
    %v748 = vpop.permute.xlu0 %747
    %v750 = vmul.f32 %v731, %v748
    %v751 = vpack.c.bf16 %v750, %v750
    %753 = vrot.lane.b32.xlu0 %v751, 32
    %v754 = vpop.permute.xlu0 %753
    %v756 = vsel %vm278, %v754, 0
    %758 = vmatprep.subr.bf16.mxu0 %v271
    %759 = vmatpush1.bf16.msra.mxu0 %v270
    %760 = vmatprep.subr.bf16.mxu0 %v273
    %761 = vmatpush1.bf16.msra.mxu0 %v272
    %762 = vmatprep.subr.bf16.mxu0 0
    %763 = vmatpush1.bf16.msra.mxu0 0
    %764 = vmatprep.subr.bf16.mxu0 0
    %765 = vmatpush1.bf16.msra.mxu0 0
    %766 = vmatprep.subr.bf16.mxu0 0
    %767 = vmatpush1.bf16.msra.mxu0 0
    %768 = vmatprep.subr.bf16.mxu0 0
    %769 = vmatpush1.bf16.msra.mxu0 0
    %770 = vmatprep.subr.bf16.mxu0 0
    %771 = vmatpush1.bf16.msra.mxu0 0
    %772 = vmatprep.subr.bf16.mxu0 0
    %773 = vmatpush1.bf16.msra.mxu0 0
    %774 = vmatprep.subr.bf16.mxu0 0
    %775 = vmatpush1.bf16.msra.mxu0 0
    %776 = vmatprep.subr.bf16.mxu0 0
    %777 = vmatpush1.bf16.msra.mxu0 0
    %778 = vmatprep.subr.bf16.mxu0 0
    %779 = vmatpush1.bf16.msra.mxu0 0
    %780 = vmatprep.subr.bf16.mxu0 0
    %781 = vmatpush1.bf16.msra.mxu0 0
    %782 = vmatprep.subr.bf16.mxu0 0
    %783 = vmatpush1.bf16.msra.mxu0 0
    %784 = vmatprep.subr.bf16.mxu0 0
    %785 = vmatpush1.bf16.msra.mxu0 0
    %786 = vmatprep.subr.bf16.mxu0 0
    %787 = vmatpush1.bf16.msra.mxu0 0
    %788 = vmatprep.subr.bf16.mxu0 0
    %789 = vmatpush1.bf16.msra.mxu0 0
    %790 = vmatprep.mubr.bf16.mxu0 0
    %791 = vmatmul.mubr.bf16.gmra.mrb[0].mxu0 %v756
    %v792 = vpop.f32.mrb[0].mxu0
    %v793 = vadd.f32 0.0, %v792
    %v794 = vpop.f32.mrb[0].mxu0
    %v795 = vadd.f32 0.0, %v794
    %v796 = vpop.f32.mrb[0].mxu0
    %v797 = vpop.f32.mrb[0].mxu0
    %798 = vdwg.mxu0
    %v799 = vpack.c.bf16 %v720, %v720
    %801 = vrot.lane.b32.xlu0 %v799, 32
    %v802 = vpop.permute.xlu0 %801
    %v804 = vsel %vm278, %v802, 0
    %806 = vmatprep.subr.bf16.mxu0 0
    %807 = vmatpush1.bf16.msra.mxu0 %v331
    %808 = vmatprep.subr.bf16.mxu0 0
    %809 = vmatpush1.bf16.msra.mxu0 %v332
    %810 = vmatprep.subr.bf16.mxu0 0
    %811 = vmatpush1.bf16.msra.mxu0 0
    %812 = vmatprep.subr.bf16.mxu0 0
    %813 = vmatpush1.bf16.msra.mxu0 0
    %814 = vmatprep.subr.bf16.mxu0 0
    %815 = vmatpush1.bf16.msra.mxu0 0
    %816 = vmatprep.subr.bf16.mxu0 0
    %817 = vmatpush1.bf16.msra.mxu0 0
    %818 = vmatprep.subr.bf16.mxu0 0
    %819 = vmatpush1.bf16.msra.mxu0 0
    %820 = vmatprep.subr.bf16.mxu0 0
    %821 = vmatpush1.bf16.msra.mxu0 0
    %822 = vmatprep.subr.bf16.mxu0 0
    %823 = vmatpush1.bf16.msra.mxu0 0
    %824 = vmatprep.subr.bf16.mxu0 0
    %825 = vmatpush1.bf16.msra.mxu0 0
    %826 = vmatprep.subr.bf16.mxu0 0
    %827 = vmatpush1.bf16.msra.mxu0 0
    %828 = vmatprep.subr.bf16.mxu0 0
    %829 = vmatpush1.bf16.msra.mxu0 0
    %830 = vmatprep.subr.bf16.mxu0 0
    %831 = vmatpush1.bf16.msra.mxu0 0
    %832 = vmatprep.subr.bf16.mxu0 0
    %833 = vmatpush1.bf16.msra.mxu0 0
    %834 = vmatprep.subr.bf16.mxu0 0
    %835 = vmatpush1.bf16.msra.mxu0 0
    %836 = vmatprep.subr.bf16.mxu0 0
    %837 = vmatpush1.bf16.msra.mxu0 0
    %838 = vmatprep.mubr.bf16.mxu0 0
    %839 = vmatmul.mubr.bf16.gmra.mrb[0].mxu0 %v804
    %v840 = vpop.f32.mrb[0].mxu0
    %v841 = vadd.f32 0.0, %v840
    %v842 = vpop.f32.mrb[0].mxu0
    %v843 = vpop.f32.mrb[0].mxu0
    %v844 = vpop.f32.mrb[0].mxu0
    %845 = vdwg.mxu0
    %v846 = vld [vmem:[#allocation2 + $0x20] sm:$0xff]
    %v847 = vadd.f32 %v846, %v793
    %v848 = vadd.f32 %v795, %v841
    %v849 = vadd.f32 %v848, %v385
    %v850 = vxor.u32 %v849, 2147483648
    %v851 = vmul.f32 %v850, 1.442695
    %v852 = vpow.pop %v851
    %v853 = vadd.f32 %v852, 1.0
    %v854 = vrcp.pop %v853
    %v855 = vmul.f32 1.0, %v854
    %v856 = vmul.f32 %v855, 2.0
    %v857 = vsub.f32 %v856, 1.0
    %v858 = vmul.f32 %v855, %v714
    %860 = vrot.lane.b32.xlu0 %v857, 64
    %v861 = vpop.permute.xlu0 %860
    %v863 = vmul.f32 %v855, %v861
    %865 = vrot.lane.b32.xlu0 %v863, 32
    %v866 = vpop.permute.xlu0 %865
    %v868 = vadd.f32 %v858, %v866
    %v869 = vtanh.pop %v868
    %871 = vrot.lane.b32.xlu0 %v869, 64
    %v872 = vpop.permute.xlu0 %871
    %v874 = vmul.f32 %v855, %v872
    %876 = vrot.lane.b32.xlu0 %v874, 32
    %v877 = vpop.permute.xlu0 %876
    %879 = vst.msk [vmem:[#allocation3 + $0x18] sm:$0xff] %vm278, %v877
    %v880 = vxor.u32 %v847, 2147483648
    %v881 = vmul.f32 %v880, 1.442695
    %v882 = vpow.pop %v881
    %v883 = vadd.f32 %v882, 1.0
    %v884 = vrcp.pop %v883
    %v885 = vmul.f32 1.0, %v884
    %v886 = vmul.f32 %v885, 2.0
    %v887 = vsub.f32 %v886, 1.0
    %v888 = vmul.f32 %v885, %v744
    %890 = vrot.lane.b32.xlu0 %v887, 64
    %v891 = vpop.permute.xlu0 %890
    %v893 = vmul.f32 %v885, %v891
    %895 = vrot.lane.b32.xlu0 %v893, 32
    %v896 = vpop.permute.xlu0 %895
    %v898 = vadd.f32 %v888, %v896
    %v899 = vtanh.pop %v898
    %901 = vrot.lane.b32.xlu0 %v899, 64
    %v902 = vpop.permute.xlu0 %901
    %v904 = vmul.f32 %v885, %v902
    %v905 = vpack.c.bf16 %v904, %v904
    %907 = vrot.lane.b32.xlu0 %v905, 32
    %v908 = vpop.permute.xlu0 %907
    %v910 = vsel %vm278, %v908, 0
    %912 = vmatprep.subr.bf16.mxu0 %v271
    %913 = vmatpush1.bf16.msra.mxu0 %v270
    %914 = vmatprep.subr.bf16.mxu0 %v273
    %915 = vmatpush1.bf16.msra.mxu0 %v272
    %916 = vmatprep.subr.bf16.mxu0 0
    %917 = vmatpush1.bf16.msra.mxu0 0
    %918 = vmatprep.subr.bf16.mxu0 0
    %919 = vmatpush1.bf16.msra.mxu0 0
    %920 = vmatprep.subr.bf16.mxu0 0
    %921 = vmatpush1.bf16.msra.mxu0 0
    %922 = vmatprep.subr.bf16.mxu0 0
    %923 = vmatpush1.bf16.msra.mxu0 0
    %924 = vmatprep.subr.bf16.mxu0 0
    %925 = vmatpush1.bf16.msra.mxu0 0
    %926 = vmatprep.subr.bf16.mxu0 0
    %927 = vmatpush1.bf16.msra.mxu0 0
    %928 = vmatprep.subr.bf16.mxu0 0
    %929 = vmatpush1.bf16.msra.mxu0 0
    %930 = vmatprep.subr.bf16.mxu0 0
    %931 = vmatpush1.bf16.msra.mxu0 0
    %932 = vmatprep.subr.bf16.mxu0 0
    %933 = vmatpush1.bf16.msra.mxu0 0
    %934 = vmatprep.subr.bf16.mxu0 0
    %935 = vmatpush1.bf16.msra.mxu0 0
    %936 = vmatprep.subr.bf16.mxu0 0
    %937 = vmatpush1.bf16.msra.mxu0 0
    %938 = vmatprep.subr.bf16.mxu0 0
    %939 = vmatpush1.bf16.msra.mxu0 0
    %940 = vmatprep.subr.bf16.mxu0 0
    %941 = vmatpush1.bf16.msra.mxu0 0
    %942 = vmatprep.subr.bf16.mxu0 0
    %943 = vmatpush1.bf16.msra.mxu0 0
    %944 = vmatprep.mubr.bf16.mxu0 0
    %945 = vmatmul.mubr.bf16.gmra.mrb[0].mxu0 %v910
    %v946 = vpop.f32.mrb[0].mxu0
    %v947 = vadd.f32 0.0, %v946
    %v948 = vpop.f32.mrb[0].mxu0
    %v949 = vadd.f32 0.0, %v948
    %v950 = vpop.f32.mrb[0].mxu0
    %v951 = vpop.f32.mrb[0].mxu0
    %952 = vdwg.mxu0
    %v953 = vpack.c.bf16 %v874, %v874
    %955 = vrot.lane.b32.xlu0 %v953, 32
    %v956 = vpop.permute.xlu0 %955
    %v958 = vsel %vm278, %v956, 0
    %960 = vmatprep.subr.bf16.mxu0 0
    %961 = vmatpush1.bf16.msra.mxu0 %v331
    %962 = vmatprep.subr.bf16.mxu0 0
    %963 = vmatpush1.bf16.msra.mxu0 %v332
    %964 = vmatprep.subr.bf16.mxu0 0
    %965 = vmatpush1.bf16.msra.mxu0 0
    %966 = vmatprep.subr.bf16.mxu0 0
    %967 = vmatpush1.bf16.msra.mxu0 0
    %968 = vmatprep.subr.bf16.mxu0 0
    %969 = vmatpush1.bf16.msra.mxu0 0
    %970 = vmatprep.subr.bf16.mxu0 0
    %971 = vmatpush1.bf16.msra.mxu0 0
    %972 = vmatprep.subr.bf16.mxu0 0
    %973 = vmatpush1.bf16.msra.mxu0 0
    %974 = vmatprep.subr.bf16.mxu0 0
    %975 = vmatpush1.bf16.msra.mxu0 0
    %976 = vmatprep.subr.bf16.mxu0 0
    %977 = vmatpush1.bf16.msra.mxu0 0
    %978 = vmatprep.subr.bf16.mxu0 0
    %979 = vmatpush1.bf16.msra.mxu0 0
    %980 = vmatprep.subr.bf16.mxu0 0
    %981 = vmatpush1.bf16.msra.mxu0 0
    %982 = vmatprep.subr.bf16.mxu0 0
    %983 = vmatpush1.bf16.msra.mxu0 0
    %984 = vmatprep.subr.bf16.mxu0 0
    %985 = vmatpush1.bf16.msra.mxu0 0
    %986 = vmatprep.subr.bf16.mxu0 0
    %987 = vmatpush1.bf16.msra.mxu0 0
    %988 = vmatprep.subr.bf16.mxu0 0
    %989 = vmatpush1.bf16.msra.mxu0 0
    %990 = vmatprep.subr.bf16.mxu0 0
    %991 = vmatpush1.bf16.msra.mxu0 0
    %992 = vmatprep.mubr.bf16.mxu0 0
    %993 = vmatmul.mubr.bf16.gmra.mrb[0].mxu0 %v958
    %v994 = vpop.f32.mrb[0].mxu0
    %v995 = vadd.f32 0.0, %v994
    %v996 = vpop.f32.mrb[0].mxu0
    %v997 = vpop.f32.mrb[0].mxu0
    %v998 = vpop.f32.mrb[0].mxu0
    %999 = vdwg.mxu0
    %v1000 = vld [vmem:[#allocation2 + $0x28] sm:$0xff]
    %v1001 = vadd.f32 %v1000, %v947
    %v1002 = vadd.f32 %v949, %v995
    %v1003 = vadd.f32 %v1002, %v385
    %v1004 = vxor.u32 %v1003, 2147483648
    %v1005 = vmul.f32 %v1004, 1.442695
    %v1006 = vpow.pop %v1005
    %v1007 = vadd.f32 %v1006, 1.0
    %v1008 = vrcp.pop %v1007
    %v1009 = vmul.f32 1.0, %v1008
    %v1010 = vmul.f32 %v1009, 2.0
    %v1011 = vsub.f32 %v1010, 1.0
    %v1012 = vmul.f32 %v1009, %v868
    %1014 = vrot.lane.b32.xlu0 %v1011, 64
    %v1015 = vpop.permute.xlu0 %1014
    %v1017 = vmul.f32 %v1009, %v1015
    %1019 = vrot.lane.b32.xlu0 %v1017, 32
    %v1020 = vpop.permute.xlu0 %1019
    %v1022 = vadd.f32 %v1012, %v1020
    %v1023 = vtanh.pop %v1022
    %1025 = vrot.lane.b32.xlu0 %v1023, 64
    %v1026 = vpop.permute.xlu0 %1025
    %v1028 = vmul.f32 %v1009, %v1026
    %1030 = vrot.lane.b32.xlu0 %v1028, 32
    %v1031 = vpop.permute.xlu0 %1030
    %1033 = vst.msk [vmem:[#allocation3 + $0x20] sm:$0xff] %vm278, %v1031
    %v1034 = vxor.u32 %v1001, 2147483648
    %v1035 = vmul.f32 %v1034, 1.442695
    %v1036 = vpow.pop %v1035
    %v1037 = vadd.f32 %v1036, 1.0
    %v1038 = vrcp.pop %v1037
    %v1039 = vmul.f32 1.0, %v1038
    %v1040 = vmul.f32 %v1039, 2.0
    %v1041 = vsub.f32 %v1040, 1.0
    %v1042 = vmul.f32 %v1039, %v898
    %1044 = vrot.lane.b32.xlu0 %v1041, 64
    %v1045 = vpop.permute.xlu0 %1044
    %v1047 = vmul.f32 %v1039, %v1045
    %1049 = vrot.lane.b32.xlu0 %v1047, 32
    %v1050 = vpop.permute.xlu0 %1049
    %v1052 = vadd.f32 %v1042, %v1050
    %v1053 = vtanh.pop %v1052
    %1055 = vrot.lane.b32.xlu0 %v1053, 64
    %v1056 = vpop.permute.xlu0 %1055
    %v1058 = vmul.f32 %v1039, %v1056
    %v1059 = vpack.c.bf16 %v1058, %v1058
    %1061 = vrot.lane.b32.xlu0 %v1059, 32
    %v1062 = vpop.permute.xlu0 %1061
    %v1064 = vsel %vm278, %v1062, 0
    %1066 = vmatprep.subr.bf16.mxu0 %v271
    %1067 = vmatpush1.bf16.msra.mxu0 %v270
    %1068 = vmatprep.subr.bf16.mxu0 %v273
    %1069 = vmatpush1.bf16.msra.mxu0 %v272
    %1070 = vmatprep.subr.bf16.mxu0 0
    %1071 = vmatpush1.bf16.msra.mxu0 0
    %1072 = vmatprep.subr.bf16.mxu0 0
    %1073 = vmatpush1.bf16.msra.mxu0 0
    %1074 = vmatprep.subr.bf16.mxu0 0
    %1075 = vmatpush1.bf16.msra.mxu0 0
    %1076 = vmatprep.subr.bf16.mxu0 0
    %1077 = vmatpush1.bf16.msra.mxu0 0
    %1078 = vmatprep.subr.bf16.mxu0 0
    %1079 = vmatpush1.bf16.msra.mxu0 0
    %1080 = vmatprep.subr.bf16.mxu0 0
    %1081 = vmatpush1.bf16.msra.mxu0 0
    %1082 = vmatprep.subr.bf16.mxu0 0
    %1083 = vmatpush1.bf16.msra.mxu0 0
    %1084 = vmatprep.subr.bf16.mxu0 0
    %1085 = vmatpush1.bf16.msra.mxu0 0
    %1086 = vmatprep.subr.bf16.mxu0 0
    %1087 = vmatpush1.bf16.msra.mxu0 0
    %1088 = vmatprep.subr.bf16.mxu0 0
    %1089 = vmatpush1.bf16.msra.mxu0 0
    %1090 = vmatprep.subr.bf16.mxu0 0
    %1091 = vmatpush1.bf16.msra.mxu0 0
    %1092 = vmatprep.subr.bf16.mxu0 0
    %1093 = vmatpush1.bf16.msra.mxu0 0
    %1094 = vmatprep.subr.bf16.mxu0 0
    %1095 = vmatpush1.bf16.msra.mxu0 0
    %1096 = vmatprep.subr.bf16.mxu0 0
    %1097 = vmatpush1.bf16.msra.mxu0 0
    %1098 = vmatprep.mubr.bf16.mxu0 0
    %1099 = vmatmul.mubr.bf16.gmra.mrb[0].mxu0 %v1064
    %v1100 = vpop.f32.mrb[0].mxu0
    %v1101 = vadd.f32 0.0, %v1100
    %v1102 = vpop.f32.mrb[0].mxu0
    %v1103 = vadd.f32 0.0, %v1102
    %v1104 = vpop.f32.mrb[0].mxu0
    %v1105 = vpop.f32.mrb[0].mxu0
    %1106 = vdwg.mxu0
    %v1107 = vpack.c.bf16 %v1028, %v1028
    %1109 = vrot.lane.b32.xlu0 %v1107, 32
    %v1110 = vpop.permute.xlu0 %1109
    %v1112 = vsel %vm278, %v1110, 0
    %1114 = vmatprep.subr.bf16.mxu0 0
    %1115 = vmatpush1.bf16.msra.mxu0 %v331
    %1116 = vmatprep.subr.bf16.mxu0 0
    %1117 = vmatpush1.bf16.msra.mxu0 %v332
    %1118 = vmatprep.subr.bf16.mxu0 0
    %1119 = vmatpush1.bf16.msra.mxu0 0
    %1120 = vmatprep.subr.bf16.mxu0 0
    %1121 = vmatpush1.bf16.msra.mxu0 0
    %1122 = vmatprep.subr.bf16.mxu0 0
    %1123 = vmatpush1.bf16.msra.mxu0 0
    %1124 = vmatprep.subr.bf16.mxu0 0
    %1125 = vmatpush1.bf16.msra.mxu0 0
    %1126 = vmatprep.subr.bf16.mxu0 0
    %1127 = vmatpush1.bf16.msra.mxu0 0
    %1128 = vmatprep.subr.bf16.mxu0 0
    %1129 = vmatpush1.bf16.msra.mxu0 0
    %1130 = vmatprep.subr.bf16.mxu0 0
    %1131 = vmatpush1.bf16.msra.mxu0 0
    %1132 = vmatprep.subr.bf16.mxu0 0
    %1133 = vmatpush1.bf16.msra.mxu0 0
    %1134 = vmatprep.subr.bf16.mxu0 0
    %1135 = vmatpush1.bf16.msra.mxu0 0
    %1136 = vmatprep.subr.bf16.mxu0 0
    %1137 = vmatpush1.bf16.msra.mxu0 0
    %1138 = vmatprep.subr.bf16.mxu0 0
    %1139 = vmatpush1.bf16.msra.mxu0 0
    %1140 = vmatprep.subr.bf16.mxu0 0
    %1141 = vmatpush1.bf16.msra.mxu0 0
    %1142 = vmatprep.subr.bf16.mxu0 0
    %1143 = vmatpush1.bf16.msra.mxu0 0
    %1144 = vmatprep.subr.bf16.mxu0 0
    %1145 = vmatpush1.bf16.msra.mxu0 0
    %1146 = vmatprep.mubr.bf16.mxu0 0
    %1147 = vmatmul.mubr.bf16.gmra.mrb[0].mxu0 %v1112
    %v1148 = vpop.f32.mrb[0].mxu0
    %v1149 = vadd.f32 0.0, %v1148
    %v1150 = vpop.f32.mrb[0].mxu0
    %v1151 = vpop.f32.mrb[0].mxu0
    %v1152 = vpop.f32.mrb[0].mxu0
    %1153 = vdwg.mxu0
    %v1154 = vld [vmem:[#allocation2 + $0x30] sm:$0xff]
    %v1155 = vadd.f32 %v1154, %v1101
    %v1156 = vadd.f32 %v1103, %v1149
    %v1157 = vadd.f32 %v1156, %v385
    %v1158 = vxor.u32 %v1157, 2147483648
    %v1159 = vmul.f32 %v1158, 1.442695
    %v1160 = vpow.pop %v1159
    %v1161 = vadd.f32 %v1160, 1.0
    %v1162 = vrcp.pop %v1161
    %v1163 = vmul.f32 1.0, %v1162
    %v1164 = vmul.f32 %v1163, 2.0
    %v1165 = vsub.f32 %v1164, 1.0
    %v1166 = vmul.f32 %v1163, %v1022
    %1168 = vrot.lane.b32.xlu0 %v1165, 64
    %v1169 = vpop.permute.xlu0 %1168
    %v1171 = vmul.f32 %v1163, %v1169
    %1173 = vrot.lane.b32.xlu0 %v1171, 32
    %v1174 = vpop.permute.xlu0 %1173
    %v1176 = vadd.f32 %v1166, %v1174
    %v1177 = vtanh.pop %v1176
    %1179 = vrot.lane.b32.xlu0 %v1177, 64
    %v1180 = vpop.permute.xlu0 %1179
    %v1182 = vmul.f32 %v1163, %v1180
    %1184 = vrot.lane.b32.xlu0 %v1182, 32
    %v1185 = vpop.permute.xlu0 %1184
    %1187 = vst.msk [vmem:[#allocation3 + $0x28] sm:$0xff] %vm278, %v1185
    %v1188 = vxor.u32 %v1155, 2147483648
    %v1189 = vmul.f32 %v1188, 1.442695
    %v1190 = vpow.pop %v1189
    %v1191 = vadd.f32 %v1190, 1.0
    %v1192 = vrcp.pop %v1191
    %v1193 = vmul.f32 1.0, %v1192
    %v1194 = vmul.f32 %v1193, 2.0
    %v1195 = vsub.f32 %v1194, 1.0
    %v1196 = vmul.f32 %v1193, %v1052
    %1198 = vrot.lane.b32.xlu0 %v1195, 64
    %v1199 = vpop.permute.xlu0 %1198
    %v1201 = vmul.f32 %v1193, %v1199
    %1203 = vrot.lane.b32.xlu0 %v1201, 32
    %v1204 = vpop.permute.xlu0 %1203
    %v1206 = vadd.f32 %v1196, %v1204
    %v1207 = vtanh.pop %v1206
    %1209 = vrot.lane.b32.xlu0 %v1207, 64
    %v1210 = vpop.permute.xlu0 %1209
    %v1212 = vmul.f32 %v1193, %v1210
    %v1213 = vpack.c.bf16 %v1212, %v1212
    %1215 = vrot.lane.b32.xlu0 %v1213, 32
    %v1216 = vpop.permute.xlu0 %1215
    %v1218 = vsel %vm278, %v1216, 0
    %1220 = vmatprep.subr.bf16.mxu0 %v271
    %1221 = vmatpush1.bf16.msra.mxu0 %v270
    %1222 = vmatprep.subr.bf16.mxu0 %v273
    %1223 = vmatpush1.bf16.msra.mxu0 %v272
    %1224 = vmatprep.subr.bf16.mxu0 0
    %1225 = vmatpush1.bf16.msra.mxu0 0
    %1226 = vmatprep.subr.bf16.mxu0 0
    %1227 = vmatpush1.bf16.msra.mxu0 0
    %1228 = vmatprep.subr.bf16.mxu0 0
    %1229 = vmatpush1.bf16.msra.mxu0 0
    %1230 = vmatprep.subr.bf16.mxu0 0
    %1231 = vmatpush1.bf16.msra.mxu0 0
    %1232 = vmatprep.subr.bf16.mxu0 0
    %1233 = vmatpush1.bf16.msra.mxu0 0
    %1234 = vmatprep.subr.bf16.mxu0 0
    %1235 = vmatpush1.bf16.msra.mxu0 0
    %1236 = vmatprep.subr.bf16.mxu0 0
    %1237 = vmatpush1.bf16.msra.mxu0 0
    %1238 = vmatprep.subr.bf16.mxu0 0
    %1239 = vmatpush1.bf16.msra.mxu0 0
    %1240 = vmatprep.subr.bf16.mxu0 0
    %1241 = vmatpush1.bf16.msra.mxu0 0
    %1242 = vmatprep.subr.bf16.mxu0 0
    %1243 = vmatpush1.bf16.msra.mxu0 0
    %1244 = vmatprep.subr.bf16.mxu0 0
    %1245 = vmatpush1.bf16.msra.mxu0 0
    %1246 = vmatprep.subr.bf16.mxu0 0
    %1247 = vmatpush1.bf16.msra.mxu0 0
    %1248 = vmatprep.subr.bf16.mxu0 0
    %1249 = vmatpush1.bf16.msra.mxu0 0
    %1250 = vmatprep.subr.bf16.mxu0 0
    %1251 = vmatpush1.bf16.msra.mxu0 0
    %1252 = vmatprep.mubr.bf16.mxu0 0
    %1253 = vmatmul.mubr.bf16.gmra.mrb[0].mxu0 %v1218
    %v1254 = vpop.f32.mrb[0].mxu0
    %v1255 = vadd.f32 0.0, %v1254
    %v1256 = vpop.f32.mrb[0].mxu0
    %v1257 = vadd.f32 0.0, %v1256
    %v1258 = vpop.f32.mrb[0].mxu0
    %v1259 = vpop.f32.mrb[0].mxu0
    %1260 = vdwg.mxu0
    %v1261 = vpack.c.bf16 %v1182, %v1182
    %1263 = vrot.lane.b32.xlu0 %v1261, 32
    %v1264 = vpop.permute.xlu0 %1263
    %v1266 = vsel %vm278, %v1264, 0
    %1268 = vmatprep.subr.bf16.mxu0 0
    %1269 = vmatpush1.bf16.msra.mxu0 %v331
    %1270 = vmatprep.subr.bf16.mxu0 0
    %1271 = vmatpush1.bf16.msra.mxu0 %v332
    %1272 = vmatprep.subr.bf16.mxu0 0
    %1273 = vmatpush1.bf16.msra.mxu0 0
    %1274 = vmatprep.subr.bf16.mxu0 0
    %1275 = vmatpush1.bf16.msra.mxu0 0
    %1276 = vmatprep.subr.bf16.mxu0 0
    %1277 = vmatpush1.bf16.msra.mxu0 0
    %1278 = vmatprep.subr.bf16.mxu0 0
    %1279 = vmatpush1.bf16.msra.mxu0 0
    %1280 = vmatprep.subr.bf16.mxu0 0
    %1281 = vmatpush1.bf16.msra.mxu0 0
    %1282 = vmatprep.subr.bf16.mxu0 0
    %1283 = vmatpush1.bf16.msra.mxu0 0
    %1284 = vmatprep.subr.bf16.mxu0 0
    %1285 = vmatpush1.bf16.msra.mxu0 0
    %1286 = vmatprep.subr.bf16.mxu0 0
    %1287 = vmatpush1.bf16.msra.mxu0 0
    %1288 = vmatprep.subr.bf16.mxu0 0
    %1289 = vmatpush1.bf16.msra.mxu0 0
    %1290 = vmatprep.subr.bf16.mxu0 0
    %1291 = vmatpush1.bf16.msra.mxu0 0
    %1292 = vmatprep.subr.bf16.mxu0 0
    %1293 = vmatpush1.bf16.msra.mxu0 0
    %1294 = vmatprep.subr.bf16.mxu0 0
    %1295 = vmatpush1.bf16.msra.mxu0 0
    %1296 = vmatprep.subr.bf16.mxu0 0
    %1297 = vmatpush1.bf16.msra.mxu0 0
    %1298 = vmatprep.subr.bf16.mxu0 0
    %1299 = vmatpush1.bf16.msra.mxu0 0
    %1300 = vmatprep.mubr.bf16.mxu0 0
    %1301 = vmatmul.mubr.bf16.gmra.mrb[0].mxu0 %v1266
    %v1302 = vpop.f32.mrb[0].mxu0
    %v1303 = vadd.f32 0.0, %v1302
    %v1304 = vpop.f32.mrb[0].mxu0
    %v1305 = vpop.f32.mrb[0].mxu0
    %v1306 = vpop.f32.mrb[0].mxu0
    %1307 = vdwg.mxu0
    %v1308 = vld [vmem:[#allocation2 + $0x38] sm:$0xff]
    %v1309 = vadd.f32 %v1308, %v1255
    %v1310 = vadd.f32 %v1257, %v1303
    %v1311 = vadd.f32 %v1310, %v385
    %v1312 = vxor.u32 %v1311, 2147483648
    %v1313 = vmul.f32 %v1312, 1.442695
    %v1314 = vpow.pop %v1313
    %v1315 = vadd.f32 %v1314, 1.0
    %v1316 = vrcp.pop %v1315
    %v1317 = vmul.f32 1.0, %v1316
    %v1318 = vmul.f32 %v1317, 2.0
    %v1319 = vsub.f32 %v1318, 1.0
    %v1320 = vmul.f32 %v1317, %v1176
    %1322 = vrot.lane.b32.xlu0 %v1319, 64
    %v1323 = vpop.permute.xlu0 %1322
    %v1325 = vmul.f32 %v1317, %v1323
    %1327 = vrot.lane.b32.xlu0 %v1325, 32
    %v1328 = vpop.permute.xlu0 %1327
    %v1330 = vadd.f32 %v1320, %v1328
    %v1331 = vtanh.pop %v1330
    %1333 = vrot.lane.b32.xlu0 %v1331, 64
    %v1334 = vpop.permute.xlu0 %1333
    %v1336 = vmul.f32 %v1317, %v1334
    %1338 = vrot.lane.b32.xlu0 %v1336, 32
    %v1339 = vpop.permute.xlu0 %1338
    %1341 = vst.msk [vmem:[#allocation3 + $0x30] sm:$0xff] %vm278, %v1339
    %v1342 = vxor.u32 %v1309, 2147483648
    %v1343 = vmul.f32 %v1342, 1.442695
    %v1344 = vpow.pop %v1343
    %v1345 = vadd.f32 %v1344, 1.0
    %v1346 = vrcp.pop %v1345
    %v1347 = vmul.f32 1.0, %v1346
    %v1348 = vmul.f32 %v1347, 2.0
    %v1349 = vsub.f32 %v1348, 1.0
    %v1350 = vmul.f32 %v1347, %v1206
    %1352 = vrot.lane.b32.xlu0 %v1349, 64
    %v1353 = vpop.permute.xlu0 %1352
    %v1355 = vmul.f32 %v1347, %v1353
    %1357 = vrot.lane.b32.xlu0 %v1355, 32
    %v1358 = vpop.permute.xlu0 %1357
    %v1360 = vadd.f32 %v1350, %v1358
    %v1361 = vtanh.pop %v1360
    %1363 = vrot.lane.b32.xlu0 %v1361, 64
    %v1364 = vpop.permute.xlu0 %1363
    %v1366 = vmul.f32 %v1347, %v1364
    %v1367 = vpack.c.bf16 %v1366, %v1366
    %1369 = vrot.lane.b32.xlu0 %v1367, 32
    %v1370 = vpop.permute.xlu0 %1369
    %v1372 = vsel %vm278, %v1370, 0
    %1374 = vmatprep.subr.bf16.mxu0 %v271
    %1375 = vmatpush1.bf16.msra.mxu0 %v270
    %1376 = vmatprep.subr.bf16.mxu0 %v273
    %1377 = vmatpush1.bf16.msra.mxu0 %v272
    %1378 = vmatprep.subr.bf16.mxu0 0
    %1379 = vmatpush1.bf16.msra.mxu0 0
    %1380 = vmatprep.subr.bf16.mxu0 0
    %1381 = vmatpush1.bf16.msra.mxu0 0
    %1382 = vmatprep.subr.bf16.mxu0 0
    %1383 = vmatpush1.bf16.msra.mxu0 0
    %1384 = vmatprep.subr.bf16.mxu0 0
    %1385 = vmatpush1.bf16.msra.mxu0 0
    %1386 = vmatprep.subr.bf16.mxu0 0
    %1387 = vmatpush1.bf16.msra.mxu0 0
    %1388 = vmatprep.subr.bf16.mxu0 0
    %1389 = vmatpush1.bf16.msra.mxu0 0
    %1390 = vmatprep.subr.bf16.mxu0 0
    %1391 = vmatpush1.bf16.msra.mxu0 0
    %1392 = vmatprep.subr.bf16.mxu0 0
    %1393 = vmatpush1.bf16.msra.mxu0 0
    %1394 = vmatprep.subr.bf16.mxu0 0
    %1395 = vmatpush1.bf16.msra.mxu0 0
    %1396 = vmatprep.subr.bf16.mxu0 0
    %1397 = vmatpush1.bf16.msra.mxu0 0
    %1398 = vmatprep.subr.bf16.mxu0 0
    %1399 = vmatpush1.bf16.msra.mxu0 0
    %1400 = vmatprep.subr.bf16.mxu0 0
    %1401 = vmatpush1.bf16.msra.mxu0 0
    %1402 = vmatprep.subr.bf16.mxu0 0
    %1403 = vmatpush1.bf16.msra.mxu0 0
    %1404 = vmatprep.subr.bf16.mxu0 0
    %1405 = vmatpush1.bf16.msra.mxu0 0
    %1406 = vmatprep.mubr.bf16.mxu0 0
    %1407 = vmatmul.mubr.bf16.gmra.mrb[0].mxu0 %v1372
    %v1408 = vpop.f32.mrb[0].mxu0
    %v1409 = vpop.f32.mrb[0].mxu0
    %v1410 = vadd.f32 0.0, %v1409
    %v1411 = vpop.f32.mrb[0].mxu0
    %v1412 = vpop.f32.mrb[0].mxu0
    %1413 = vdwg.mxu0
    %v1414 = vpack.c.bf16 %v1336, %v1336
    %1416 = vrot.lane.b32.xlu0 %v1414, 32
    %v1417 = vpop.permute.xlu0 %1416
    %v1419 = vsel %vm278, %v1417, 0
    %1421 = vmatprep.subr.bf16.mxu0 0
    %1422 = vmatpush1.bf16.msra.mxu0 %v331
    %1423 = vmatprep.subr.bf16.mxu0 0
    %1424 = vmatpush1.bf16.msra.mxu0 %v332
    %1425 = vmatprep.subr.bf16.mxu0 0
    %1426 = vmatpush1.bf16.msra.mxu0 0
    %1427 = vmatprep.subr.bf16.mxu0 0
    %1428 = vmatpush1.bf16.msra.mxu0 0
    %1429 = vmatprep.subr.bf16.mxu0 0
    %1430 = vmatpush1.bf16.msra.mxu0 0
    %1431 = vmatprep.subr.bf16.mxu0 0
    %1432 = vmatpush1.bf16.msra.mxu0 0
    %1433 = vmatprep.subr.bf16.mxu0 0
    %1434 = vmatpush1.bf16.msra.mxu0 0
    %1435 = vmatprep.subr.bf16.mxu0 0
    %1436 = vmatpush1.bf16.msra.mxu0 0
    %1437 = vmatprep.subr.bf16.mxu0 0
    %1438 = vmatpush1.bf16.msra.mxu0 0
    %1439 = vmatprep.subr.bf16.mxu0 0
    %1440 = vmatpush1.bf16.msra.mxu0 0
    %1441 = vmatprep.subr.bf16.mxu0 0
    %1442 = vmatpush1.bf16.msra.mxu0 0
    %1443 = vmatprep.subr.bf16.mxu0 0
    %1444 = vmatpush1.bf16.msra.mxu0 0
    %1445 = vmatprep.subr.bf16.mxu0 0
    %1446 = vmatpush1.bf16.msra.mxu0 0
    %1447 = vmatprep.subr.bf16.mxu0 0
    %1448 = vmatpush1.bf16.msra.mxu0 0
    %1449 = vmatprep.subr.bf16.mxu0 0
    %1450 = vmatpush1.bf16.msra.mxu0 0
    %1451 = vmatprep.subr.bf16.mxu0 0
    %1452 = vmatpush1.bf16.msra.mxu0 0
    %1453 = vmatprep.mubr.bf16.mxu0 0
    %1454 = vmatmul.mubr.bf16.gmra.mrb[0].mxu0 %v1419
    %v1455 = vpop.f32.mrb[0].mxu0
    %v1456 = vadd.f32 0.0, %v1455
    %v1457 = vpop.f32.mrb[0].mxu0
    %v1458 = vpop.f32.mrb[0].mxu0
    %v1459 = vpop.f32.mrb[0].mxu0
    %1460 = vdwg.mxu0
    %v1461 = vadd.f32 %v1410, %v1456
    %v1462 = vadd.f32 %v1461, %v385
    %v1463 = vxor.u32 %v1462, 2147483648
    %v1464 = vmul.f32 %v1463, 1.442695
    %v1465 = vpow.pop %v1464
    %v1466 = vadd.f32 %v1465, 1.0
    %v1467 = vrcp.pop %v1466
    %v1468 = vmul.f32 1.0, %v1467
    %v1469 = vmul.f32 %v1468, 2.0
    %v1470 = vsub.f32 %v1469, 1.0
    %v1471 = vmul.f32 %v1468, %v1330
    %1473 = vrot.lane.b32.xlu0 %v1470, 64
    %v1474 = vpop.permute.xlu0 %1473
    %v1476 = vmul.f32 %v1468, %v1474
    %1478 = vrot.lane.b32.xlu0 %v1476, 32
    %v1479 = vpop.permute.xlu0 %1478
    %v1481 = vadd.f32 %v1471, %v1479
    %v1482 = vtanh.pop %v1481
    %1484 = vrot.lane.b32.xlu0 %v1482, 64
    %v1485 = vpop.permute.xlu0 %1484
    %v1487 = vmul.f32 %v1468, %v1485
    %1489 = vrot.lane.b32.xlu0 %v1487, 32
    %v1490 = vpop.permute.xlu0 %1489
    %1492 = vst.msk [vmem:[#allocation3 + $0x38] sm:$0xff] %vm278, %v1490
    %v1493 = vld [vmem:[#allocation3] sm:$0xff]
    %v1494 = vld [vmem:[#allocation3 + $0x8] sm:$0xff]
    %v1495 = vld [vmem:[#allocation3 + $0x10] sm:$0xff]
    %v1496 = vld [vmem:[#allocation3 + $0x18] sm:$0xff]
    %v1497 = vld [vmem:[#allocation3 + $0x20] sm:$0xff]
    %v1498 = vld [vmem:[#allocation3 + $0x28] sm:$0xff]
    %v1499 = vld [vmem:[#allocation3 + $0x30] sm:$0xff]
    %v1500 = vld [vmem:[#allocation3 + $0x38] sm:$0xff]
    %v1501 = vpack.c.bf16 %v1487, %v1487
    %v1502 = vld [vmem:[%s6] sm:$0xf]
    %v1503 = vld [vmem:[%s6 + $0x4] sm:$0xf]
    %v1504 = vld [vmem:[%s6 + $0x8] sm:$0xf]
    %v1505 = vld [vmem:[%s6 + $0xc] sm:$0xf]
    %v1506 = vld [vmem:[%s7] sm:$0x1]
    %v1508 = vlaneseq
    %v1509 = vshrl.u32 %v1508, 7
    %v1510 = vsub.s32 0, %v1509
    %v1511 = vrot.slane %v1506, %v1510
    %1514 = vrot.lane.b32.xlu0 %v1501, 32
    %v1515 = vpop.permute.xlu0 %1514
    %v1520 = vunpack.c.l.b16 %v1502
    %v1521 = vunpack.c.l.b16 %v1503
    %v1522 = vunpack.c.l.b16 %v1504
    %v1523 = vunpack.c.l.b16 %v1505
    %v1524 = vpack.c.b16 %v1521, %v1520
    %v1525 = vpack.c.b16 %v1523, %v1522
    %v1529 = vsel %vm278, %v1515, 0
    %1531 = vmatprep.subr.bf16.mxu0 0
    %1532 = vmatpush1.bf16.msra.mxu0 %v1524
    %1533 = vmatprep.subr.bf16.mxu0 0
    %1534 = vmatpush1.bf16.msra.mxu0 %v1525
    %1535 = vmatprep.subr.bf16.mxu0 0
    %1536 = vmatpush1.bf16.msra.mxu0 0
    %1537 = vmatprep.subr.bf16.mxu0 0
    %1538 = vmatpush1.bf16.msra.mxu0 0
    %1539 = vmatprep.subr.bf16.mxu0 0
    %1540 = vmatpush1.bf16.msra.mxu0 0
    %1541 = vmatprep.subr.bf16.mxu0 0
    %1542 = vmatpush1.bf16.msra.mxu0 0
    %1543 = vmatprep.subr.bf16.mxu0 0
    %1544 = vmatpush1.bf16.msra.mxu0 0
    %1545 = vmatprep.subr.bf16.mxu0 0
    %1546 = vmatpush1.bf16.msra.mxu0 0
    %1547 = vmatprep.subr.bf16.mxu0 0
    %1548 = vmatpush1.bf16.msra.mxu0 0
    %1549 = vmatprep.subr.bf16.mxu0 0
    %1550 = vmatpush1.bf16.msra.mxu0 0
    %1551 = vmatprep.subr.bf16.mxu0 0
    %1552 = vmatpush1.bf16.msra.mxu0 0
    %1553 = vmatprep.subr.bf16.mxu0 0
    %1554 = vmatpush1.bf16.msra.mxu0 0
    %1555 = vmatprep.subr.bf16.mxu0 0
    %1556 = vmatpush1.bf16.msra.mxu0 0
    %1557 = vmatprep.subr.bf16.mxu0 0
    %1558 = vmatpush1.bf16.msra.mxu0 0
    %1559 = vmatprep.subr.bf16.mxu0 0
    %1560 = vmatpush1.bf16.msra.mxu0 0
    %1561 = vmatprep.subr.bf16.mxu0 0
    %1562 = vmatpush1.bf16.msra.mxu0 0
    %1563 = vmatprep.mubr.bf16.mxu0 0
    %1564 = vmatmul.mubr.bf16.gmra.mrb[0].mxu0 %v1529
    %v1565 = vpop.f32.mrb[0].mxu0
    %v1566 = vadd.f32 %v1511, %v1565
    %v1567 = vpop.f32.mrb[0].mxu0
    %v1568 = vpop.f32.mrb[0].mxu0
    %v1569 = vpop.f32.mrb[0].mxu0
    %1570 = vdwg.mxu0
    %v1571 = vpack.c.bf16 %v1494, %v1493
    %v1572 = vpack.c.bf16 %v1496, %v1495
    %v1573 = vpack.c.bf16 %v1498, %v1497
    %v1574 = vpack.c.bf16 %v1500, %v1499
    %v1575 = vld [vmem:[%s8] sm:$0xf]
    %v1576 = vld [vmem:[%s8 + $0x4] sm:$0xf]
    %v1577 = vld [vmem:[%s8 + $0x8] sm:$0xf]
    %v1578 = vld [vmem:[%s8 + $0xc] sm:$0xf]
    %v1579 = vld [vmem:[%s9] sm:$0x1]
    %v1581 = vlaneseq
    %v1582 = vshrl.u32 %v1581, 7
    %v1583 = vsub.s32 0, %v1582
    %v1584 = vrot.slane %v1579, %v1583
    %v1590 = vunpack.c.l.b16 %v1575
    %v1591 = vunpack.c.l.b16 %v1576
    %v1592 = vunpack.c.l.b16 %v1577
    %v1593 = vunpack.c.l.b16 %v1578
    %v1594 = vpack.c.b16 %v1591, %v1590
    %v1595 = vpack.c.b16 %v1593, %v1592
    %v1599 = vsel %vm278, %v1571, 0
    %v1602 = vsel %vm278, %v1572, 0
    %v1605 = vsel %vm278, %v1573, 0
    %v1608 = vsel %vm278, %v1574, 0
    %1610 = vmatprep.subr.bf16.mxu0 0
    %1611 = vmatpush1.bf16.msra.mxu0 %v1594
    %1612 = vmatprep.subr.bf16.mxu0 0
    %1613 = vmatpush1.bf16.msra.mxu0 %v1595
    %1614 = vmatprep.subr.bf16.mxu0 0
    %1615 = vmatpush1.bf16.msra.mxu0 0
    %1616 = vmatprep.subr.bf16.mxu0 0
    %1617 = vmatpush1.bf16.msra.mxu0 0
    %1618 = vmatprep.subr.bf16.mxu0 0
    %1619 = vmatpush1.bf16.msra.mxu0 0
    %1620 = vmatprep.subr.bf16.mxu0 0
    %1621 = vmatpush1.bf16.msra.mxu0 0
    %1622 = vmatprep.subr.bf16.mxu0 0
    %1623 = vmatpush1.bf16.msra.mxu0 0
    %1624 = vmatprep.subr.bf16.mxu0 0
    %1625 = vmatpush1.bf16.msra.mxu0 0
    %1626 = vmatprep.subr.bf16.mxu0 0
    %1627 = vmatpush1.bf16.msra.mxu0 0
    %1628 = vmatprep.subr.bf16.mxu0 0
    %1629 = vmatpush1.bf16.msra.mxu0 0
    %1630 = vmatprep.subr.bf16.mxu0 0
    %1631 = vmatpush1.bf16.msra.mxu0 0
    %1632 = vmatprep.subr.bf16.mxu0 0
    %1633 = vmatpush1.bf16.msra.mxu0 0
    %1634 = vmatprep.subr.bf16.mxu0 0
    %1635 = vmatpush1.bf16.msra.mxu0 0
    %1636 = vmatprep.subr.bf16.mxu0 0
    %1637 = vmatpush1.bf16.msra.mxu0 0
    %1638 = vmatprep.subr.bf16.mxu0 0
    %1639 = vmatpush1.bf16.msra.mxu0 0
    %1640 = vmatprep.subr.bf16.mxu0 0
    %1641 = vmatpush1.bf16.msra.mxu0 0
    %1642 = vmatprep.mubr.bf16.mxu0 0
    %1643 = vmatmul.mubr.bf16.gmra.mrb[0].mxu0 %v1599
    %v1644 = vpop.f32.mrb[0].mxu0
    %v1645 = vadd.f32 %v1584, %v1644
    %v1646 = vpop.f32.mrb[0].mxu0
    %v1647 = vpop.f32.mrb[0].mxu0
    %v1648 = vadd.f32 %v1584, %v1647
    %v1649 = vpop.f32.mrb[0].mxu0
    %1650 = vmatprep.mubr.bf16.mxu0 0
    %1651 = vmatmul.mubr.bf16.gmra.mrb[0].mxu0 %v1602
    %v1652 = vpop.f32.mrb[0].mxu0
    %v1653 = vadd.f32 %v1584, %v1652
    %v1654 = vpop.f32.mrb[0].mxu0
    %v1655 = vpop.f32.mrb[0].mxu0
    %v1656 = vadd.f32 %v1584, %v1655
    %v1657 = vpop.f32.mrb[0].mxu0
    %1658 = vmatprep.mubr.bf16.mxu0 0
    %1659 = vmatmul.mubr.bf16.gmra.mrb[0].mxu0 %v1605
    %v1660 = vpop.f32.mrb[0].mxu0
    %v1661 = vadd.f32 %v1584, %v1660
    %v1662 = vpop.f32.mrb[0].mxu0
    %v1663 = vpop.f32.mrb[0].mxu0
    %v1664 = vadd.f32 %v1584, %v1663
    %v1665 = vpop.f32.mrb[0].mxu0
    %1666 = vmatprep.mubr.bf16.mxu0 0
    %1667 = vmatmul.mubr.bf16.gmra.mrb[0].mxu0 %v1608
    %v1668 = vpop.f32.mrb[0].mxu0
    %v1669 = vadd.f32 %v1584, %v1668
    %v1670 = vpop.f32.mrb[0].mxu0
    %v1671 = vpop.f32.mrb[0].mxu0
    %v1672 = vadd.f32 %v1584, %v1671
    %v1673 = vpop.f32.mrb[0].mxu0
    %1674 = vdwg.mxu0
    %v1675 = vadd.f32 %v1645, %v1566
    %v1676 = vadd.f32 %v1648, %v1566
    %v1677 = vadd.f32 %v1653, %v1566
    %v1678 = vadd.f32 %v1656, %v1566
    %v1679 = vadd.f32 %v1661, %v1566
    %v1680 = vadd.f32 %v1664, %v1566
    %v1681 = vadd.f32 %v1669, %v1566
    %v1682 = vadd.f32 %v1672, %v1566
    %v1683 = vtanh.pop %v1675
    %v1684 = vtanh.pop %v1676
    %v1685 = vtanh.pop %v1677
    %v1686 = vtanh.pop %v1678
    %v1687 = vtanh.pop %v1679
    %v1688 = vtanh.pop %v1680
    %v1689 = vtanh.pop %v1681
    %v1690 = vtanh.pop %v1682
    %v1691 = vld [vmem:[%s10] sm:$0x1]
    %v1693 = vlaneseq
    %v1694 = vshrl.u32 %v1693, 7
    %v1695 = vsub.s32 0, %v1694
    %v1696 = vrot.slane %v1691, %v1695
    %v1698 = vmul.f32 %v1683, %v1696
    %v1699 = vmul.f32 %v1684, %v1696
    %v1700 = vmul.f32 %v1685, %v1696
    %v1701 = vmul.f32 %v1686, %v1696
    %v1702 = vmul.f32 %v1687, %v1696
    %v1703 = vmul.f32 %v1688, %v1696
    %v1704 = vmul.f32 %v1689, %v1696
    %v1705 = vmul.f32 %v1690, %v1696
    %v1706 = vsel %vm278, %v1698, 0.0
    %1707 = vadd.xlane.f32.xlu0 %v1706
    %v1708 = vpop.xlane.xlu0 %1707
    %v1709 = vsel %vm278, %v1699, 0.0
    %1710 = vadd.xlane.f32.xlu0 %v1709
    %v1711 = vpop.xlane.xlu0 %1710
    %v1712 = vsel %vm278, %v1700, 0.0
    %1713 = vadd.xlane.f32.xlu0 %v1712
    %v1714 = vpop.xlane.xlu0 %1713
    %v1715 = vsel %vm278, %v1701, 0.0
    %1716 = vadd.xlane.f32.xlu0 %v1715
    %v1717 = vpop.xlane.xlu0 %1716
    %v1718 = vsel %vm278, %v1702, 0.0
    %1719 = vadd.xlane.f32.xlu0 %v1718
    %v1720 = vpop.xlane.xlu0 %1719
    %v1721 = vsel %vm278, %v1703, 0.0
    %1722 = vadd.xlane.f32.xlu0 %v1721
    %v1723 = vpop.xlane.xlu0 %1722
    %v1724 = vsel %vm278, %v1704, 0.0
    %1725 = vadd.xlane.f32.xlu0 %v1724
    %v1726 = vpop.xlane.xlu0 %1725
    %v1727 = vsel %vm278, %v1705, 0.0
    %1728 = vadd.xlane.f32.xlu0 %v1727
    %v1729 = vpop.xlane.xlu0 %1728
    %v1730 = vld [vmem:[#allocation4] sm:$0x1]
    %v1732 = vlaneseq
    %v1733 = vshrl.u32 %v1732, 7
    %v1734 = vsub.s32 0, %v1733
    %v1735 = vrot.slane %v1730, %v1734
    %v1737 = vadd.f32 %v1708, %v1735
    %v1738 = vadd.f32 %v1711, %v1735
    %v1739 = vadd.f32 %v1714, %v1735
    %v1740 = vadd.f32 %v1717, %v1735
    %v1741 = vadd.f32 %v1720, %v1735
    %v1742 = vadd.f32 %v1723, %v1735
    %v1743 = vadd.f32 %v1726, %v1735
    %v1744 = vadd.f32 %v1729, %v1735
    %v1745 = vmax.f32 %v1737, %v1738
    %v1746 = vmax.f32 %v1745, %v1739
    %v1747 = vmax.f32 %v1746, %v1740
    %v1748 = vmax.f32 %v1747, %v1741
    %v1749 = vmax.f32 %v1748, %v1742
    %v1750 = vmax.f32 %v1749, %v1743
    %v1751 = vmax.f32 %v1750, %v1744
    %v1752 = vsub.f32 %v1737, %v1751
    %v1753 = vsub.f32 %v1738, %v1751
    %v1754 = vsub.f32 %v1739, %v1751
    %v1755 = vsub.f32 %v1740, %v1751
    %v1756 = vsub.f32 %v1741, %v1751
    %v1757 = vsub.f32 %v1742, %v1751
    %v1758 = vsub.f32 %v1743, %v1751
    %v1759 = vsub.f32 %v1744, %v1751
    %v1760 = vmul.f32 %v1752, 1.442695
    %v1761 = vpow.pop %v1760
    %v1762 = vmul.f32 %v1753, 1.442695
    %v1763 = vpow.pop %v1762
    %v1764 = vmul.f32 %v1754, 1.442695
    %v1765 = vpow.pop %v1764
    %v1766 = vmul.f32 %v1755, 1.442695
    %v1767 = vpow.pop %v1766
    %v1768 = vmul.f32 %v1756, 1.442695
    %v1769 = vpow.pop %v1768
    %v1770 = vmul.f32 %v1757, 1.442695
    %v1771 = vpow.pop %v1770
    %v1772 = vmul.f32 %v1758, 1.442695
    %v1773 = vpow.pop %v1772
    %v1774 = vmul.f32 %v1759, 1.442695
    %v1775 = vpow.pop %v1774
    %v1776 = vadd.f32 %v1761, %v1763
    %v1777 = vadd.f32 %v1776, %v1765
    %v1778 = vadd.f32 %v1777, %v1767
    %v1779 = vadd.f32 %v1778, %v1769
    %v1780 = vadd.f32 %v1779, %v1771
    %v1781 = vadd.f32 %v1780, %v1773
    %v1782 = vadd.f32 %v1781, %v1775
    %v1783 = vrcp.pop %v1782
    %v1784 = vmul.f32 %v1761, %v1783
    %v1785 = vmul.f32 %v1763, %v1783
    %v1786 = vmul.f32 %v1765, %v1783
    %v1787 = vmul.f32 %v1767, %v1783
    %v1788 = vmul.f32 %v1769, %v1783
    %v1789 = vmul.f32 %v1771, %v1783
    %v1790 = vmul.f32 %v1773, %v1783
    %v1791 = vmul.f32 %v1775, %v1783
    %1793 = vrot.lane.b32.xlu0 %v1785, 1
    %v1794 = vpop.permute.xlu0 %1793
    %1797 = vrot.lane.b32.xlu0 %v1786, 2
    %v1798 = vpop.permute.xlu0 %1797
    %1801 = vrot.lane.b32.xlu0 %v1787, 3
    %v1802 = vpop.permute.xlu0 %1801
    %1805 = vrot.lane.b32.xlu0 %v1788, 4
    %v1806 = vpop.permute.xlu0 %1805
    %1809 = vrot.lane.b32.xlu0 %v1789, 5
    %v1810 = vpop.permute.xlu0 %1809
    %1813 = vrot.lane.b32.xlu0 %v1790, 6
    %v1814 = vpop.permute.xlu0 %1813
    %1817 = vrot.lane.b32.xlu0 %v1791, 7
    %v1818 = vpop.permute.xlu0 %1817
    %vm1820 = vcmask 7168
    %v1821 = vsel %vm1820, %v1784, %v1794
    %vm1822 = vcmask 15360
    %v1823 = vsel %vm1822, %v1821, %v1798
    %vm1824 = vcmask 23552
    %v1825 = vsel %vm1824, %v1823, %v1802
    %vm1826 = vcmask 31744
    %v1827 = vsel %vm1826, %v1825, %v1806
    %vm1828 = vcmask 39936
    %v1829 = vsel %vm1828, %v1827, %v1810
    %vm1830 = vcmask 48128
    %v1831 = vsel %vm1830, %v1829, %v1814
    %vm1832 = vcmask 56320
    %v1833 = vsel %vm1832, %v1831, %v1818
    %vm1834 = vcmask 64512
    %1835 = vst.msk [vmem:[#allocation11] sm:$0xff] %vm1834, %v1833
    %1837 = vset.pattern.permute.xlu0 0
    %1838 = vperm.xlu0 %1837, %v1784
    %v1839 = vpop.permute.xlu0 %1838
    %1841 = vset.pattern.permute.xlu0 0
    %1842 = vperm.xlu0 %1841, %v1785
    %v1843 = vpop.permute.xlu0 %1842
    %1845 = vset.pattern.permute.xlu0 0
    %1846 = vperm.xlu0 %1845, %v1786
    %v1847 = vpop.permute.xlu0 %1846
    %1849 = vset.pattern.permute.xlu0 0
    %1850 = vperm.xlu0 %1849, %v1787
    %v1851 = vpop.permute.xlu0 %1850
    %1853 = vset.pattern.permute.xlu0 0
    %1854 = vperm.xlu0 %1853, %v1788
    %v1855 = vpop.permute.xlu0 %1854
    %1857 = vset.pattern.permute.xlu0 0
    %1858 = vperm.xlu0 %1857, %v1789
    %v1859 = vpop.permute.xlu0 %1858
    %1861 = vset.pattern.permute.xlu0 0
    %1862 = vperm.xlu0 %1861, %v1790
    %v1863 = vpop.permute.xlu0 %1862
    %1865 = vset.pattern.permute.xlu0 0
    %1866 = vperm.xlu0 %1865, %v1791
    %v1867 = vpop.permute.xlu0 %1866
    %v1869 = vmul.f32 %v1839, %v1493
    %v1870 = vmul.f32 %v1843, %v1494
    %v1871 = vmul.f32 %v1847, %v1495
    %v1872 = vmul.f32 %v1851, %v1496
    %v1873 = vmul.f32 %v1855, %v1497
    %v1874 = vmul.f32 %v1859, %v1498
    %v1875 = vmul.f32 %v1863, %v1499
    %v1876 = vmul.f32 %v1867, %v1500
    %v1877 = vadd.f32 %v1869, %v1870
    %v1878 = vadd.f32 %v1877, %v1871
    %v1879 = vadd.f32 %v1878, %v1872
    %v1880 = vadd.f32 %v1879, %v1873
    %v1881 = vadd.f32 %v1880, %v1874
    %v1882 = vadd.f32 %v1881, %v1875
    %v1883 = vadd.f32 %v1882, %v1876
    %v1884 = vpack.c.bf16 %v1883, %v1883
    %v1885 = vld [vmem:[%s12] sm:$0xf]
    %v1886 = vld [vmem:[%s12 + $0x4] sm:$0xf]
    %v1887 = vld [vmem:[%s12 + $0x8] sm:$0xf]
    %v1888 = vld [vmem:[%s12 + $0xc] sm:$0xf]
    %v1889 = vld [vmem:[%s13] sm:$0x1]
    %v1891 = vlaneseq
    %v1892 = vshrl.u32 %v1891, 7
    %v1893 = vsub.s32 0, %v1892
    %v1894 = vrot.slane %v1889, %v1893
    %v1900 = vunpack.c.l.b16 %v1885
    %v1901 = vunpack.c.l.b16 %v1886
    %v1902 = vunpack.c.l.b16 %v1887
    %v1903 = vunpack.c.l.b16 %v1888
    %v1904 = vpack.c.b16 %v1901, %v1900
    %v1905 = vpack.c.b16 %v1903, %v1902
    %v1909 = vsel %vm278, %v1884, 0
    %1911 = vmatprep.subr.bf16.mxu0 0
    %1912 = vmatpush1.bf16.msra.mxu0 %v1904
    %1913 = vmatprep.subr.bf16.mxu0 0
    %1914 = vmatpush1.bf16.msra.mxu0 %v1905
    %1915 = vmatprep.subr.bf16.mxu0 0
    %1916 = vmatpush1.bf16.msra.mxu0 0
    %1917 = vmatprep.subr.bf16.mxu0 0
    %1918 = vmatpush1.bf16.msra.mxu0 0
    %1919 = vmatprep.subr.bf16.mxu0 0
    %1920 = vmatpush1.bf16.msra.mxu0 0
    %1921 = vmatprep.subr.bf16.mxu0 0
    %1922 = vmatpush1.bf16.msra.mxu0 0
    %1923 = vmatprep.subr.bf16.mxu0 0
    %1924 = vmatpush1.bf16.msra.mxu0 0
    %1925 = vmatprep.subr.bf16.mxu0 0
    %1926 = vmatpush1.bf16.msra.mxu0 0
    %1927 = vmatprep.subr.bf16.mxu0 0
    %1928 = vmatpush1.bf16.msra.mxu0 0
    %1929 = vmatprep.subr.bf16.mxu0 0
    %1930 = vmatpush1.bf16.msra.mxu0 0
    %1931 = vmatprep.subr.bf16.mxu0 0
    %1932 = vmatpush1.bf16.msra.mxu0 0
    %1933 = vmatprep.subr.bf16.mxu0 0
    %1934 = vmatpush1.bf16.msra.mxu0 0
    %1935 = vmatprep.subr.bf16.mxu0 0
    %1936 = vmatpush1.bf16.msra.mxu0 0
    %1937 = vmatprep.subr.bf16.mxu0 0
    %1938 = vmatpush1.bf16.msra.mxu0 0
    %1939 = vmatprep.subr.bf16.mxu0 0
    %1940 = vmatpush1.bf16.msra.mxu0 0
    %1941 = vmatprep.subr.bf16.mxu0 0
    %1942 = vmatpush1.bf16.msra.mxu0 0
    %1943 = vmatprep.mubr.bf16.mxu0 0
    %1944 = vmatmul.mubr.bf16.gmra.mrb[0].mxu0 %v1909
    %v1945 = vpop.f32.mrb[0].mxu0
    %v1946 = vadd.f32 %v1894, %v1945
    %v1947 = vpop.f32.mrb[0].mxu0
    %v1948 = vpop.f32.mrb[0].mxu0
    %v1949 = vpop.f32.mrb[0].mxu0
    %1950 = vdwg.mxu0
    %1951 = vst.msk [vmem:[%s14] sm:$0xff] %vm1826, %v1946
    // Predicated region
    $region70: #{tpu_custom_call.1} parent=1 // pred_check
      _
    $region71: #{tpu_custom_call.1} parent=1 // pred_check_branch
      %1953 = sbr.rel (0) target = $region73
    $region72: #{tpu_custom_call.1} parent=1 // pred_region
      _
    $region73: #{tpu_custom_call.1} parent=1 // pred_fallthru
      _
    // Predicated region
    $region74: #{tpu_custom_call.1} parent=1 // pred_check
      _
    $region75: #{tpu_custom_call.1} parent=1 // pred_check_branch
      %1955 = sbr.rel (0) target = $region77
    $region76: #{tpu_custom_call.1} parent=1 // pred_region
      %s1957 = ssub.s32 128, 128
      %1958 = vsyncadd [#allocation7], %s1957
      %s1960 = sshll.u32 [#allocation11], 4
      %s1961 = int_to_ptr.vmem [resolvable:$true] %s1960
      %1963 = dma.vmem_to_hbm [thread:$0]  %s1961, 128, %s15, [#allocation7]
    $region77: #{tpu_custom_call.1} parent=1 // pred_fallthru
      _
    // Predicated region
    $region78: #{tpu_custom_call.1} parent=1 // pred_check
      _
    $region79: #{tpu_custom_call.1} parent=1 // pred_check_branch
      %1965 = sbr.rel (0) target = $region81
    $region80: #{tpu_custom_call.1} parent=1 // pred_region
      _
    $region81: #{tpu_custom_call.1} parent=1 // pred_fallthru
      _
    // Predicated region
    $region82: #{tpu_custom_call.1} parent=1 // pred_check
      _
    $region83: #{tpu_custom_call.1} parent=1 // pred_check_branch
      %1967 = sbr.rel (0) target = $region85
    $region84: #{tpu_custom_call.1} parent=1 // pred_region
      %1968 = dma.done [#allocation7], 128
    $region85: #{tpu_custom_call.1} parent=1 // pred_fallthru
      _
    %1969 = vsyncpa [#allocation6], 1
    %1970 = vsyncpa [#allocation9], 1
    %1971 = vsyncpa [#allocation7], 1

</llo_original>
